<compile_context>
chip_gen: v6e
topology: v6e:2x2x1
jax: 0.10.0
libtpu: 0.0.40
codegen_flags: <defaults>
</compile_context>

<pallas_src>
import jax
import jax.numpy as jnp
from jax.experimental import pallas as pl
from jax.experimental.pallas import tpu as pltpu

_LANE = 128
_MAX_TILE = 8192   # lanes per grid step; per-step DMA >> 0.35 us fixed cost
_SLAB_ROWS = 7     # 0-3: loc - loc_targets, 4: pos, 5: pos|neg, 6: ce


def _round_up(x, m):
    return (x + m - 1) // m * m


def _pad_lanes(x, r_pad):
    r = x.shape[-1]
    if r == r_pad:
        return x
    return jnp.pad(x, ((0, 0), (0, r_pad - r)))


# ------------------------------------------------------------------
# Pallas kernel 1: per-prior cross entropy, lane-dense layout.
#   conf:(C, T)  tgt:(1, T) int32  ->  ce:(1, T)
#   ce = logsumexp_over_classes(x) - x[target]
# ------------------------------------------------------------------
def _ce_kernel(conf_ref, tgt_ref, ce_ref):
    x = conf_ref[...].astype(jnp.float32)                     # (C, T)
    t = tgt_ref[...]                                          # (1, T) int32
    x_max = jnp.max(x, axis=0, keepdims=True)                 # (1, T)
    lse = jnp.log(jnp.sum(jnp.exp(x - x_max), axis=0, keepdims=True)) + x_max
    cls = jax.lax.broadcasted_iota(jnp.int32, x.shape, 0)     # class on sublane
    x_t = jnp.sum(jnp.where(cls == t, x, 0.0), axis=0, keepdims=True)
    ce_ref[...] = lse - x_t


def cross_entropy_per_prior(conf_cr, tgt_1r, tile):
    C, R = conf_cr.shape
    grid = R // tile
    return pl.pallas_call(
        _ce_kernel,
        out_shape=jax.ShapeDtypeStruct((1, R), jnp.float32),
        grid=(grid,),
        in_specs=[
            pl.BlockSpec((C, tile), lambda i: (0, i)),
            pl.BlockSpec((1, tile), lambda i: (0, i)),
        ],
        out_specs=pl.BlockSpec((1, tile), lambda i: (0, i)),
        compiler_params=pltpu.CompilerParams(
            dimension_semantics=("parallel",),
            allow_input_fusion=[True, True]),
    )(conf_cr, tgt_1r)


# ------------------------------------------------------------------
# Pallas kernel 2: fused masked reductions over one coalesced slab.
#   slab:(7, T) f32 -> per-core partial sums broadcast into (8,128) blocks.
#   Per-step work is purely elementwise (VPU); the XLU cross-lane collapse
#   runs once per core at the final "arbitrary" step.
# ------------------------------------------------------------------
def _loss_kernel(slab_ref, locl_ref, confl_ref, acc_loc, acc_conf):
    i = pl.program_id(1)

    @pl.when(i == 0)
    def _():
        acc_loc[...] = jnp.zeros_like(acc_loc)
        acc_conf[...] = jnp.zeros_like(acc_conf)

    slab = slab_ref[...]                                       # (7, T)
    d = slab[0:4, :]                                           # loc - loc_t
    ad = jnp.abs(d)
    sl1 = jnp.where(ad < 1.0, 0.5 * d * d, ad - 0.5)           # (4, T)
    acc_loc[...] += sl1 * slab[4:5, :]                         # * pos
    acc_conf[...] += slab[6:7, :] * slab[5:6, :]               # ce * (pos|neg)

    @pl.when(i == pl.num_programs(1) - 1)
    def _():
        loc_tot = jnp.sum(jnp.sum(acc_loc[...], axis=1, keepdims=True),
                          axis=0, keepdims=True)               # (1, 1)
        conf_tot = jnp.sum(jnp.sum(acc_conf[...], axis=1, keepdims=True),
                           axis=0, keepdims=True)              # (1, 1)
        locl_ref[...] = jnp.broadcast_to(loc_tot, locl_ref.shape)
        confl_ref[...] = jnp.broadcast_to(conf_tot, confl_ref.shape)


def masked_loss_sums(slab, tile):
    R = slab.shape[1]
    steps_per_core = R // (2 * tile)
    out_shapes = (jax.ShapeDtypeStruct((16, 128), jnp.float32),
                  jax.ShapeDtypeStruct((16, 128), jnp.float32))
    out_loc, out_conf = pl.pallas_call(
        _loss_kernel,
        out_shape=out_shapes,
        grid=(2, steps_per_core),
        in_specs=[
            pl.BlockSpec((_SLAB_ROWS, tile),
                         lambda c, i, s=steps_per_core: (0, c * s + i)),
        ],
        out_specs=(pl.BlockSpec((8, 128), lambda c, i: (c, 0)),
                   pl.BlockSpec((8, 128), lambda c, i: (c, 0))),
        scratch_shapes=[pltpu.VMEM((4, tile), jnp.float32),
                        pltpu.VMEM((1, tile), jnp.float32)],
        compiler_params=pltpu.CompilerParams(
            dimension_semantics=("parallel", "arbitrary")),
    )(slab)
    loc_sum = out_loc[0, 0] + out_loc[8, 0]
    conf_sum = out_conf[0, 0] + out_conf[8, 0]
    return loc_sum, conf_sum


# ------------------------------------------------------------------
# Plain-JAX glue: SSD prior matching (argmax IoU assignment + encode)
# ------------------------------------------------------------------
def _point_form(boxes_ccwh):
    return jnp.concatenate([boxes_ccwh[:, :2] - boxes_ccwh[:, 2:] / 2.0,
                            boxes_ccwh[:, :2] + boxes_ccwh[:, 2:] / 2.0], axis=1)


def _jaccard(a, b):
    lt = jnp.maximum(a[:, None, :2], b[None, :, :2])
    rb = jnp.minimum(a[:, None, 2:], b[None, :, 2:])
    wh = jnp.clip(rb - lt, 0.0, None)
    inter = wh[..., 0] * wh[..., 1]
    area_a = (a[:, 2] - a[:, 0]) * (a[:, 3] - a[:, 1])
    area_b = (b[:, 2] - b[:, 0]) * (b[:, 3] - b[:, 1])
    union = area_a[:, None] + area_b[None, :] - inter
    return inter / union


def _encode(matched_xyxy, priors_ccwh, variance):
    g_cxcy = ((matched_xyxy[:, :2] + matched_xyxy[:, 2:]) / 2.0
              - priors_ccwh[:, :2]) / (variance[0] * priors_ccwh[:, 2:])
    g_wh = jnp.log((matched_xyxy[:, 2:] - matched_xyxy[:, :2])
                   / priors_ccwh[:, 2:]) / variance[1]
    return jnp.concatenate([g_cxcy, g_wh], axis=1)


def _match(iou_thresh, truths, labels, priors, variance):
    overlaps = _jaccard(truths, _point_form(priors))            # (n_gt, P)
    best_prior_idx = jnp.argmax(overlaps, axis=1)                # (n_gt,)
    best_truth_overlap = jnp.max(overlaps, axis=0)               # (P,)
    best_truth_idx = jnp.argmax(overlaps, axis=0)                # (P,)
    best_truth_overlap = best_truth_overlap.at[best_prior_idx].set(2.0)
    best_truth_idx = best_truth_idx.at[best_prior_idx].set(
        jnp.arange(truths.shape[0]))
    matches = truths[best_truth_idx]                             # (P, 4)
    conf = labels[best_truth_idx].astype(jnp.int32) + 1
    conf = jnp.where(best_truth_overlap < iou_thresh, 0, conf)
    loc = _encode(matches, priors, variance)
    return loc, conf


# ------------------------------------------------------------------
# MultiBoxLoss forward
# ------------------------------------------------------------------
class MultiBoxLoss:
    def __init__(self, num_classes, variance=(0.1, 0.2),
                 iou_thresh=0.5, neg_pos_ratio=3):
        self.num_classes = num_classes
        self.variance = variance
        self.iou_thresh = iou_thresh
        self.neg_pos_ratio = neg_pos_ratio

    def __call__(self, predictions, targets):
        loc_data, conf_data, priors = predictions
        B, P, C = conf_data.shape
        R = B * P

        truths = targets[:, :, :4]
        labels = targets[:, :, 4]
        # TODO(synk): IoU matching stays in plain JAX (data-dependent argmax
        # scatter has no clean Pallas equivalent at these tiny GT counts).
        loc_targets, conf_targets = jax.vmap(
            lambda t, l: _match(self.iou_thresh, t, l, priors, self.variance)
        )(truths, labels)                                        # (B,P,4), (B,P)

        # lane-dense layout: priors (B*P) on the 128-lane axis; row padding is
        # a multiple of 2*tile so the reduction grid splits over 2 cores.
        tile = min(_MAX_TILE, _round_up(R, _LANE))
        r_pad = _round_up(R, 2 * tile)

        conf_cr = _pad_lanes(jnp.moveaxis(conf_data, -1, 0).reshape(C, R), r_pad)
        tgt_1r = _pad_lanes(conf_targets.reshape(1, R).astype(jnp.int32), r_pad)

        # --- per-prior cross entropy (Pallas, row-tiled, parallel grid) ---
        ce_pad = cross_entropy_per_prior(conf_cr, tgt_1r, tile)  # (1, r_pad)
        ce = ce_pad[:, :R].reshape(B, P)

        # --- hard negative mining: single descending sort + per-row cutoff ---
        # (equivalent to the double-argsort rank when CE values are distinct;
        #  ties exactly at the cutoff over-select.)
        pos_mask = conf_targets > 0
        ce_neg = jnp.where(pos_mask, 0.0, ce)
        num_pos = jnp.sum(pos_mask, axis=1, keepdims=True)
        num_neg = jnp.minimum(self.neg_pos_ratio * num_pos, P - num_pos)
        sorted_desc = -jnp.sort(-ce_neg, axis=1)
        cutoff = jnp.take_along_axis(sorted_desc,
                                     jnp.clip(num_neg - 1, 0, P - 1), axis=1)
        cutoff = jnp.where(num_neg > 0, cutoff, jnp.inf)
        neg_mask = jnp.logical_and(ce_neg >= cutoff, jnp.logical_not(pos_mask))
        mask = jnp.logical_or(pos_mask, neg_mask)

        # --- coalesce pass-2 operands into one lane-dense (7, r_pad) slab ---
        # Padded lanes of the mask rows are zero, which neutralises the
        # log(C) garbage in ce_pad's padded lanes (keep that invariant).
        slab6 = jnp.concatenate(
            [jnp.moveaxis(loc_data - loc_targets, -1, 0).reshape(4, R),
             pos_mask.reshape(1, R).astype(jnp.float32),
             mask.reshape(1, R).astype(jnp.float32)], axis=0)    # (6, R)
        slab = jnp.concatenate([_pad_lanes(slab6, r_pad), ce_pad], axis=0)

        # --- fused masked reductions (Pallas, megacore-split accumulator) ---
        loc_sum, conf_sum = masked_loss_sums(slab, tile)

        # normalization by positive count done in glue (scalar); guard n >= 1.
        n = jnp.maximum(jnp.sum(num_pos).astype(jnp.float32), 1.0)
        return loc_sum / n, conf_sum / n


# ------------------------------------------------------------------
# Pure-JAX reference (faithful port of the PyTorch spec, for checking)
# ------------------------------------------------------------------
def _reference(loc_data, conf_data, priors, targets, cfg):
    B, P, C = conf_data.shape
    loc_t, conf_t = jax.vmap(
        lambda t, l: _match(cfg["iou_thresh"], t, l, priors, cfg["variance"])
    )(targets[:, :, :4], targets[:, :, 4])
    x = conf_data.reshape(B * P, C)
    lse = jax.scipy.special.logsumexp(x, axis=1)
    ce = (lse - x[jnp.arange(B * P), conf_t.reshape(-1)]).reshape(B, P)
    pos = conf_t > 0
    n = jnp.sum(pos)
    ce_neg = jnp.where(pos, 0.0, ce)
    idx = jnp.argsort(-ce_neg, axis=1)
    rank = jnp.argsort(idx, axis=1)
    num_pos = jnp.sum(pos, axis=1, keepdims=True)
    num_neg = jnp.minimum(cfg["neg_pos_ratio"] * num_pos, P - num_pos)
    mask = jnp.logical_or(pos, rank < num_neg)
    d = loc_data - loc_t
    ad = jnp.abs(d)
    sl1 = jnp.where(ad < 1.0, 0.5 * d * d, ad - 0.5)
    loc_loss = jnp.sum(sl1 * pos[..., None]) / n
    conf_loss = jnp.sum(ce * mask) / n
    return loc_loss, conf_loss


if __name__ == "__main__":
    # ssd_cfg-style deterministic configuration (synthetic, small)
    cfg = dict(num_classes=8, variance=(0.1, 0.2), iou_thresh=0.5,
               neg_pos_ratio=3)
    # P=1024 so the CE grid has 2 steps and the reduction grid is (2, 1)
    B, P, C, NGT = 2, 1024, cfg["num_classes"], 3

    key = jax.random.PRNGKey(0)
    k1, k2, k3, k4, k5, k6 = jax.random.split(key, 6)

    # priors: ccwh in (0,1)
    prior_c = jax.random.uniform(k1, (P, 2), minval=0.1, maxval=0.9)
    prior_wh = jax.random.uniform(k2, (P, 2), minval=0.1, maxval=0.3)
    priors = jnp.concatenate([prior_c, prior_wh], axis=1).astype(jnp.float32)

    # ground-truth targets: [B, NGT, 5] (xyxy + label, no background class)
    gt_c = jax.random.uniform(k3, (B, NGT, 2), minval=0.2, maxval=0.8)
    gt_wh = jax.random.uniform(k4, (B, NGT, 2), minval=0.15, maxval=0.4)
    gt_xyxy = jnp.concatenate([gt_c - gt_wh / 2, gt_c + gt_wh / 2], axis=-1)
    gt_xyxy = jnp.clip(gt_xyxy, 0.0, 1.0)
    gt_labels = jax.random.randint(k5, (B, NGT, 1), 0, C - 1).astype(jnp.float32)
    targets = jnp.concatenate([gt_xyxy, gt_labels], axis=-1)

    # network predictions
    loc_data = 0.1 * jax.random.normal(k6, (B, P, 4), dtype=jnp.float32)
    conf_data = jax.random.normal(jax.random.PRNGKey(1), (B, P, C),
                                  dtype=jnp.float32)

    criterion = MultiBoxLoss(**cfg)
    loss_fn = jax.jit(lambda ld, cd, pr, tg: criterion((ld, cd, pr), tg))
    loc_loss, conf_loss = loss_fn(loc_data, conf_data, priors, targets)
    loc_loss = jax.block_until_ready(loc_loss)
    conf_loss = jax.block_until_ready(conf_loss)

    loc_ref, conf_ref = _reference(loc_data, conf_data, priors, targets, cfg)
    assert jnp.allclose(loc_loss, loc_ref, rtol=1e-4, atol=1e-5), (loc_loss, loc_ref)
    assert jnp.allclose(conf_loss, conf_ref, rtol=1e-4, atol=1e-5), (conf_loss, conf_ref)

    print("KERNEL_OK")
</pallas_src>

<mosaic_0001>
module attributes {stable_mosaic.version = 11 : i64} {
  func.func @_ce_kernel(%arg0: i32, %arg1: memref<8x2048xf32, #tpu.memory_space<vmem>>, %arg2: memref<1x2048xi32, #tpu.memory_space<vmem>>, %arg3: memref<1x2048xf32, #tpu.memory_space<vmem>>) attributes {dimension_semantics = [#tpu.dimension_semantics<parallel>], iteration_bounds = array<i64: 2>, scalar_prefetch = 0 : i64, scratch_operands = 0 : i64, tpu.core_type = #tpu.core_type<tc>, window_params = [{transform_indices = @transform_0, window_bounds = array<i64: 8, 2048>}, {transform_indices = @transform_1, window_bounds = array<i64: 1, 2048>}, {transform_indices = @transform_2, window_bounds = array<i64: 1, 2048>}]} {
    %c0 = arith.constant 0 : index
    %c0_0 = arith.constant 0 : index
    %0 = vector.load %arg1[%c0, %c0_0] : memref<8x2048xf32, #tpu.memory_space<vmem>>, vector<8x2048xf32>
    %c0_1 = arith.constant 0 : index
    %c0_2 = arith.constant 0 : index
    %1 = vector.load %arg2[%c0_1, %c0_2] : memref<1x2048xi32, #tpu.memory_space<vmem>>, vector<1x2048xi32>
    %cst = arith.constant dense<0xFF800000> : vector<2048xf32>
    %2 = vector.multi_reduction <maximumf>, %0, %cst [0] : vector<8x2048xf32> to vector<2048xf32>
    %3 = vector.shape_cast %2 : vector<2048xf32> to vector<1x2048xf32>
    %4 = vector.broadcast %3 : vector<1x2048xf32> to vector<8x2048xf32>
    %5 = arith.subf %0, %4 : vector<8x2048xf32>
    %6 = math.exp %5 : vector<8x2048xf32>
    %cst_3 = arith.constant dense<0.000000e+00> : vector<2048xf32>
    %7 = vector.multi_reduction <add>, %6, %cst_3 [0] : vector<8x2048xf32> to vector<2048xf32>
    %8 = vector.shape_cast %7 : vector<2048xf32> to vector<1x2048xf32>
    %9 = math.log %8 : vector<1x2048xf32>
    %10 = arith.addf %9, %3 : vector<1x2048xf32>
    %11 = tpu.iota {dimensions = array<i32: 0>} : vector<8x2048xi32>
    %12 = vector.broadcast %1 : vector<1x2048xi32> to vector<8x2048xi32>
    %13 = arith.cmpi eq, %11, %12 : vector<8x2048xi32>
    %cst_4 = arith.constant 0.000000e+00 : f32
    %14 = vector.broadcast %cst_4 : f32 to vector<8x2048xf32>
    %15 = arith.select %13, %0, %14 : vector<8x2048xi1>, vector<8x2048xf32>
    %cst_5 = arith.constant dense<0.000000e+00> : vector<2048xf32>
    %16 = vector.multi_reduction <add>, %15, %cst_5 [0] : vector<8x2048xf32> to vector<2048xf32>
    %17 = vector.shape_cast %16 : vector<2048xf32> to vector<1x2048xf32>
    %18 = arith.subf %10, %17 : vector<1x2048xf32>
    %c0_6 = arith.constant 0 : index
    %c0_7 = arith.constant 0 : index
    %19 = vector.load %arg3[%c0_6, %c0_7] : memref<1x2048xf32, #tpu.memory_space<vmem>>, vector<1x2048xf32>
    tpu.vector_store %arg3[%c0_6, %c0_7], %18 {strides = array<i32>} : memref<1x2048xf32, #tpu.memory_space<vmem>>, vector<1x2048xf32>,
    return
  }
  func.func @transform_0(%arg0: i32) -> (i32, i32) {
    %c0_i32 = arith.constant 0 : i32
    %c0_i32_0 = arith.constant 0 : i32
    return %c0_i32, %arg0 : i32, i32
  }
  func.func @transform_1(%arg0: i32) -> (i32, i32) {
    %c0_i32 = arith.constant 0 : i32
    %c0_i32_0 = arith.constant 0 : i32
    return %c0_i32, %arg0 : i32, i32
  }
  func.func @transform_2(%arg0: i32) -> (i32, i32) {
    %c0_i32 = arith.constant 0 : i32
    %c0_i32_0 = arith.constant 0 : i32
    return %c0_i32, %arg0 : i32, i32
  }
}

module attributes {stable_mosaic.version = 11 : i64} {
  func.func @_loss_kernel(%arg0: i32, %arg1: i32, %arg2: memref<7x2048xf32, #tpu.memory_space<vmem>>, %arg3: memref<8x128xf32, #tpu.memory_space<vmem>>, %arg4: memref<8x128xf32, #tpu.memory_space<vmem>>, %arg5: memref<4x2048xf32, #tpu.memory_space<vmem>>, %arg6: memref<1x2048xf32, #tpu.memory_space<vmem>>) attributes {dimension_semantics = [#tpu.dimension_semantics<parallel>, #tpu.dimension_semantics<arbitrary>], iteration_bounds = array<i64: 2, 1>, scalar_prefetch = 0 : i64, scratch_operands = 2 : i64, tpu.core_type = #tpu.core_type<tc>, window_params = [{transform_indices = @transform_0, window_bounds = array<i64: 7, 2048>}, {transform_indices = @transform_1, window_bounds = array<i64: 8, 128>}, {transform_indices = @transform_2, window_bounds = array<i64: 8, 128>}]} {
    %c0_i32 = arith.constant 0 : i32
    %0 = arith.cmpi eq, %arg1, %c0_i32 : i32
    %1 = arith.extui %0 : i1 to i32
    %c0_i32_0 = arith.constant 0 : i32
    %2 = arith.cmpi ne, %1, %c0_i32_0 : i32
    scf.if %2 {
      %cst_14 = arith.constant 0.000000e+00 : f32
      %29 = vector.broadcast %cst_14 : f32 to vector<4x2048xf32>
      %c0_15 = arith.constant 0 : index
      %c0_16 = arith.constant 0 : index
      %30 = vector.load %arg5[%c0_15, %c0_16] : memref<4x2048xf32, #tpu.memory_space<vmem>>, vector<4x2048xf32>
      tpu.vector_store %arg5[%c0_15, %c0_16], %29 {strides = array<i32>} : memref<4x2048xf32, #tpu.memory_space<vmem>>, vector<4x2048xf32>,
      %cst_17 = arith.constant 0.000000e+00 : f32
      %31 = vector.broadcast %cst_17 : f32 to vector<1x2048xf32>
      %c0_18 = arith.constant 0 : index
      %c0_19 = arith.constant 0 : index
      %32 = vector.load %arg6[%c0_18, %c0_19] : memref<1x2048xf32, #tpu.memory_space<vmem>>, vector<1x2048xf32>
      tpu.vector_store %arg6[%c0_18, %c0_19], %31 {strides = array<i32>} : memref<1x2048xf32, #tpu.memory_space<vmem>>, vector<1x2048xf32>,
    } else {
    }
    %c0 = arith.constant 0 : index
    %c0_1 = arith.constant 0 : index
    %3 = vector.load %arg2[%c0, %c0_1] : memref<7x2048xf32, #tpu.memory_space<vmem>>, vector<7x2048xf32>
    %4 = vector.extract_strided_slice %3 {offsets = [0, 0], sizes = [4, 2048], strides = [1, 1]} : vector<7x2048xf32> to vector<4x2048xf32>
    %5 = math.absf %4 : vector<4x2048xf32>
    %cst = arith.constant 1.000000e+00 : f32
    %6 = vector.broadcast %cst : f32 to vector<4x2048xf32>
    %7 = arith.cmpf olt, %5, %6 : vector<4x2048xf32>
    %cst_2 = arith.constant 5.000000e-01 : f32
    %8 = vector.broadcast %cst_2 : f32 to vector<4x2048xf32>
    %9 = arith.mulf %8, %4 : vector<4x2048xf32>
    %10 = arith.mulf %9, %4 : vector<4x2048xf32>
    %cst_3 = arith.constant 5.000000e-01 : f32
    %11 = vector.broadcast %cst_3 : f32 to vector<4x2048xf32>
    %12 = arith.subf %5, %11 : vector<4x2048xf32>
    %13 = arith.select %7, %10, %12 : vector<4x2048xi1>, vector<4x2048xf32>
    %c0_4 = arith.constant 0 : index
    %c0_5 = arith.constant 0 : index
    %14 = vector.load %arg5[%c0_4, %c0_5] : memref<4x2048xf32, #tpu.memory_space<vmem>>, vector<4x2048xf32>
    %15 = vector.extract_strided_slice %3 {offsets = [4, 0], sizes = [1, 2048], strides = [1, 1]} : vector<7x2048xf32> to vector<1x2048xf32>
    %16 = vector.broadcast %15 : vector<1x2048xf32> to vector<4x2048xf32>
    %17 = arith.mulf %13, %16 : vector<4x2048xf32>
    %18 = arith.addf %14, %17 : vector<4x2048xf32>
    %c0_6 = arith.constant 0 : index
    %c0_7 = arith.constant 0 : index
    %19 = vector.load %arg5[%c0_6, %c0_7] : memref<4x2048xf32, #tpu.memory_space<vmem>>, vector<4x2048xf32>
    tpu.vector_store %arg5[%c0_6, %c0_7], %18 {strides = array<i32>} : memref<4x2048xf32, #tpu.memory_space<vmem>>, vector<4x2048xf32>,
    %c0_8 = arith.constant 0 : index
    %c0_9 = arith.constant 0 : index
    %20 = vector.load %arg6[%c0_8, %c0_9] : memref<1x2048xf32, #tpu.memory_space<vmem>>, vector<1x2048xf32>
    %21 = vector.extract_strided_slice %3 {offsets = [6, 0], sizes = [1, 2048], strides = [1, 1]} : vector<7x2048xf32> to vector<1x2048xf32>
    %22 = vector.extract_strided_slice %3 {offsets = [5, 0], sizes = [1, 2048], strides = [1, 1]} : vector<7x2048xf32> to vector<1x2048xf32>
    %23 = arith.mulf %21, %22 : vector<1x2048xf32>
    %24 = arith.addf %20, %23 : vector<1x2048xf32>
    %c0_10 = arith.constant 0 : index
    %c0_11 = arith.constant 0 : index
    %25 = vector.load %arg6[%c0_10, %c0_11] : memref<1x2048xf32, #tpu.memory_space<vmem>>, vector<1x2048xf32>
    tpu.vector_store %arg6[%c0_10, %c0_11], %24 {strides = array<i32>} : memref<1x2048xf32, #tpu.memory_space<vmem>>, vector<1x2048xf32>,
    %c0_i32_12 = arith.constant 0 : i32
    %26 = arith.cmpi eq, %arg1, %c0_i32_12 : i32
    %27 = arith.extui %26 : i1 to i32
    %c0_i32_13 = arith.constant 0 : i32
    %28 = arith.cmpi ne, %27, %c0_i32_13 : i32
    scf.if %28 {
      %c0_14 = arith.constant 0 : index
      %c0_15 = arith.constant 0 : index
      %29 = vector.load %arg5[%c0_14, %c0_15] : memref<4x2048xf32, #tpu.memory_space<vmem>>, vector<4x2048xf32>
      %cst_16 = arith.constant dense<0.000000e+00> : vector<4xf32>
      %30 = vector.multi_reduction <add>, %29, %cst_16 [1] : vector<4x2048xf32> to vector<4xf32>
      %31 = vector.shape_cast %30 : vector<4xf32> to vector<4x1xf32>
      %cst_17 = arith.constant dense<0.000000e+00> : vector<1xf32>
      %32 = vector.multi_reduction <add>, %31, %cst_17 [0] : vector<4x1xf32> to vector<1xf32>
      %33 = vector.shape_cast %32 : vector<1xf32> to vector<1x1xf32>
      %c0_18 = arith.constant 0 : index
      %c0_19 = arith.constant 0 : index
      %34 = vector.load %arg6[%c0_18, %c0_19] : memref<1x2048xf32, #tpu.memory_space<vmem>>, vector<1x2048xf32>
      %cst_20 = arith.constant dense<0.000000e+00> : vector<1xf32>
      %35 = vector.multi_reduction <add>, %34, %cst_20 [1] : vector<1x2048xf32> to vector<1xf32>
      %36 = vector.shape_cast %35 : vector<1xf32> to vector<1x1xf32>
      %cst_21 = arith.constant dense<0.000000e+00> : vector<1xf32>
      %37 = vector.multi_reduction <add>, %36, %cst_21 [0] : vector<1x1xf32> to vector<1xf32>
      %38 = vector.shape_cast %37 : vector<1xf32> to vector<1x1xf32>
      %39 = vector.shape_cast %33 : vector<1x1xf32> to vector<1x1xf32>
      %40 = vector.broadcast %39 : vector<1x1xf32> to vector<8x128xf32>
      %c0_22 = arith.constant 0 : index
      %c0_23 = arith.constant 0 : index
      %41 = vector.load %arg3[%c0_22, %c0_23] : memref<8x128xf32, #tpu.memory_space<vmem>>, vector<8x128xf32>
      tpu.vector_store %arg3[%c0_22, %c0_23], %40 {strides = array<i32>} : memref<8x128xf32, #tpu.memory_space<vmem>>, vector<8x128xf32>,
      %42 = vector.shape_cast %38 : vector<1x1xf32> to vector<1x1xf32>
      %43 = vector.broadcast %42 : vector<1x1xf32> to vector<8x128xf32>
      %c0_24 = arith.constant 0 : index
      %c0_25 = arith.constant 0 : index
      %44 = vector.load %arg4[%c0_24, %c0_25] : memref<8x128xf32, #tpu.memory_space<vmem>>, vector<8x128xf32>
      tpu.vector_store %arg4[%c0_24, %c0_25], %43 {strides = array<i32>} : memref<8x128xf32, #tpu.memory_space<vmem>>, vector<8x128xf32>,
    } else {
    }
    return
  }
  func.func @transform_0(%arg0: i32, %arg1: i32) -> (i32, i32) {
    %c1_i32 = arith.constant 1 : i32
    %0 = arith.muli %arg0, %c1_i32 : i32
    %1 = arith.addi %0, %arg1 : i32
    %c0_i32 = arith.constant 0 : i32
    %c0_i32_0 = arith.constant 0 : i32
    return %c0_i32, %1 : i32, i32
  }
  func.func @transform_1(%arg0: i32, %arg1: i32) -> (i32, i32) {
    %c0_i32 = arith.constant 0 : i32
    %c0_i32_0 = arith.constant 0 : i32
    return %arg0, %c0_i32 : i32, i32
  }
  func.func @transform_2(%arg0: i32, %arg1: i32) -> (i32, i32) {
    %c0_i32 = arith.constant 0 : i32
    %c0_i32_0 = arith.constant 0 : i32
    return %arg0, %c0_i32 : i32, i32
  }
}

</mosaic_0001>

<llo_original>
// kernel: neg.3
$region0: #{neg.3}
  #allocation0 [shape = 's32[1]{0}', space=sflag, size = 0x4, scoped, tag = 'scoped memory for neg.3']
  %s0 = inlined_call_operand.vmem [shape: f32[2,1024], index: 0, kind: input, shape index: {}]
  %s1 = inlined_call_operand.vmem [shape: f32[2,1024], index: 1, kind: output, shape index: {}]
  %v2 = vld [vmem:[%s0] sm:$0x3]
  %3 = xla_tuple %v2
  %4 = xla_tuple %3
  %v5 = vxor.u32 %v2, 2147483648
  %6 = xla_tuple %v5
  %7 = vst [vmem:[%s1] sm:$0x3] %v5
  %s8 = scalar_lea.vmem %s0, 2
  %v9 = vld [vmem:[%s8] sm:$0x3]
  %10 = xla_tuple %v9
  %11 = xla_tuple %10
  %v12 = vxor.u32 %v9, 2147483648
  %13 = xla_tuple %v12
  %s14 = scalar_lea.vmem %s1, 2
  %15 = vst [vmem:[%s14] sm:$0x3] %v12
  %s16 = scalar_lea.vmem %s0, 4
  %v17 = vld [vmem:[%s16] sm:$0x3]
  %18 = xla_tuple %v17
  %19 = xla_tuple %18
  %v20 = vxor.u32 %v17, 2147483648
  %21 = xla_tuple %v20
  %s22 = scalar_lea.vmem %s1, 4
  %23 = vst [vmem:[%s22] sm:$0x3] %v20
  %s24 = scalar_lea.vmem %s0, 6
  %v25 = vld [vmem:[%s24] sm:$0x3]
  %26 = xla_tuple %v25
  %27 = xla_tuple %26
  %v28 = vxor.u32 %v25, 2147483648
  %29 = xla_tuple %v28
  %s30 = scalar_lea.vmem %s1, 6
  %31 = vst [vmem:[%s30] sm:$0x3] %v28
  %s32 = scalar_lea.vmem %s0, 8
  %v33 = vld [vmem:[%s32] sm:$0x3]
  %34 = xla_tuple %v33
  %35 = xla_tuple %34
  %v36 = vxor.u32 %v33, 2147483648
  %37 = xla_tuple %v36
  %s38 = scalar_lea.vmem %s1, 8
  %39 = vst [vmem:[%s38] sm:$0x3] %v36
  %s40 = scalar_lea.vmem %s0, 10
  %v41 = vld [vmem:[%s40] sm:$0x3]
  %42 = xla_tuple %v41
  %43 = xla_tuple %42
  %v44 = vxor.u32 %v41, 2147483648
  %45 = xla_tuple %v44
  %s46 = scalar_lea.vmem %s1, 10
  %47 = vst [vmem:[%s46] sm:$0x3] %v44
  %s48 = scalar_lea.vmem %s0, 12
  %v49 = vld [vmem:[%s48] sm:$0x3]
  %50 = xla_tuple %v49
  %51 = xla_tuple %50
  %v52 = vxor.u32 %v49, 2147483648
  %53 = xla_tuple %v52
  %s54 = scalar_lea.vmem %s1, 12
  %55 = vst [vmem:[%s54] sm:$0x3] %v52
  %s56 = scalar_lea.vmem %s0, 14
  %v57 = vld [vmem:[%s56] sm:$0x3]
  %58 = xla_tuple %v57
  %59 = xla_tuple %58
  %v60 = vxor.u32 %v57, 2147483648
  %61 = xla_tuple %v60
  %s62 = scalar_lea.vmem %s1, 14
  %63 = vst [vmem:[%s62] sm:$0x3] %v60

// kernel: _lambda_.4
$region0: #{_lambda_.4}
  #allocation0 [shape = 'u32[]', space=smem, size = 0x4, offset = 0x4, fixed_abs, tag = 'smem constant byte address 0x4 - core index']
  #allocation1 [shape = 'u32[144,128]{1,0:T(1,128)}', space=vmem, size = 0x12000, scoped, tag = 'internal scratch']
  #allocation2 [shape = 'u32[2048]{0}', space=vmem, size = 0x2000, scoped, tag = 'scoped memory for _lambda_.4']
  #allocation3 [shape = 'u32[2048]{0}', space=vmem, size = 0x2000, scoped, tag = 'scoped memory for _lambda_.4']
  #allocation4 [shape = 'u32[2048]{0}', space=vmem, size = 0x2000, scoped, tag = 'scoped memory for _lambda_.4']
  #allocation5 [shape = 'u32[2048]{0}', space=vmem, size = 0x2000, scoped, tag = 'scoped memory for _lambda_.4']
  #allocation6 [shape = 'u32[2048]{0}', space=vmem, size = 0x2000, scoped, tag = 'scoped memory for _lambda_.4']
  #allocation7 [shape = 'u32[2048]{0}', space=vmem, size = 0x2000, scoped, tag = 'scoped memory for _lambda_.4']
  #allocation8 [shape = 'u32[2048]{0}', space=vmem, size = 0x2000, scoped, tag = 'scoped memory for _lambda_.4']
  #allocation9 [shape = 'u32[2048]{0}', space=vmem, size = 0x2000, scoped, tag = 'scoped memory for _lambda_.4']
  #allocation10 [shape = 'u32[2048]{0}', space=vmem, size = 0x2000, scoped, tag = 'scoped memory for _lambda_.4']
  #allocation11 [shape = 'u32[2048]{0}', space=vmem, size = 0x2000, scoped, tag = 'scoped memory for _lambda_.4']
  %s0 = inlined_call_operand.vmem [shape: f32[8,2048], index: 0, kind: input, shape index: {}]
  %s1 = inlined_call_operand.<no memory space> [shape: f32[], index: 1, kind: input, shape index: {}]
  %s2 = inlined_call_operand.vmem [shape: s32[1,2048], index: 2, kind: input, shape index: {}]
  %s3 = inlined_call_operand.<no memory space> [shape: s32[], index: 3, kind: input, shape index: {}]
  %s4 = inlined_call_operand.vmem [shape: f32[1,4096], index: 4, kind: output, shape index: {}]
  %s5 = sld [smem:[#allocation0]]
  $region41: #{_lambda_.4} parent=0
    _
  %s7 = ssub.s32 1, %s5
  %s8 = scalar_select 0, %s7, %s5
  %v9 = vstv %s1
  %v10 = vstv %s3
  loop: start=0, step=1, limit=4
  $region2: #{_lambda_.4} parent=0 // loop_pre_header
    _
  $region3: #{_lambda_.4} parent=0 // loop_header
    %s12 = sphi 0, %s16
    %p13 = scmp.ge.s32.totalorder %s12, 4
    %s22 = sphi 0, %s24
    %s25 = sphi 0, %s22
    %s26 = sphi 0, %s25
    %s42 = sphi 0, %s26
    %s48 = sphi 0, %s50
    %s51 = sphi 0, %s48
    %s52 = sphi 0, %s51
    %s68 = sphi 0, %s52
    %s74 = sphi 0, %s76
    %s77 = sphi 0, %s74
    %s78 = sphi 0, %s77
    %s94 = sphi 0, %s78
  $region4: #{_lambda_.4} parent=0 // loop_header_branch
    %15 = sbr.rel (%p13) target = $region8
  $region5: #{_lambda_.4} parent=0 // loop_body
    %s17 = ssub.s32 %s12, 1
    %s18 = ssub.s32 %s12, 2
    %s19 = sadd.s32 %s12, 1
    %s20 = ssub.s32 %s12, %s19
    %p21 = scmp.eq.s32.totalorder %s20, 0
    %s23 = sadd.s32 %s22, 1
    %s24 = scalar_select %p21, %s22, %s23
    %p27 = pneg %p21
    %p28 = scmp.eq.s32.totalorder %s12, 1
    %p29 = por %p27, %p28
    %p30 = scmp.ne.s32.totalorder %s22, %s25
    %p31 = scmp.eq.s32.totalorder %s12, 0
    %p32 = por %p30, %p31
    %p33 = scmp.ne.s32.totalorder %s22, %s25
    %p34 = scmp.eq.s32.totalorder %s17, 1
    %p35 = por %p33, %p34
    %p36 = scmp.ne.s32.totalorder %s25, %s26
    %p37 = scmp.eq.s32.totalorder %s17, 0
    %p38 = por %p36, %p37
    %p39 = scmp.ne.s32.totalorder %s25, %s26
    %p40 = scmp.eq.s32.totalorder %s18, 1
    %p41 = por %p39, %p40
    %p43 = scmp.ne.s32.totalorder %s26, %s42
    %p44 = scmp.eq.s32.totalorder %s18, 0
    %p45 = por %p43, %p44
    %s46 = ssub.s32 %s12, %s19
    %p47 = scmp.eq.s32.totalorder %s46, 0
    %s49 = sadd.s32 %s48, 1
    %s50 = scalar_select %p47, %s48, %s49
    %p53 = pneg %p47
    %p54 = scmp.eq.s32.totalorder %s12, 1
    %p55 = por %p53, %p54
    %p56 = scmp.ne.s32.totalorder %s48, %s51
    %p57 = scmp.eq.s32.totalorder %s12, 0
    %p58 = por %p56, %p57
    %p59 = scmp.ne.s32.totalorder %s48, %s51
    %p60 = scmp.eq.s32.totalorder %s17, 1
    %p61 = por %p59, %p60
    %p62 = scmp.ne.s32.totalorder %s51, %s52
    %p63 = scmp.eq.s32.totalorder %s17, 0
    %p64 = por %p62, %p63
    %p65 = scmp.ne.s32.totalorder %s51, %s52
    %p66 = scmp.eq.s32.totalorder %s18, 1
    %p67 = por %p65, %p66
    %p69 = scmp.ne.s32.totalorder %s52, %s68
    %p70 = scmp.eq.s32.totalorder %s18, 0
    %p71 = por %p69, %p70
    %s72 = ssub.s32 %s12, %s19
    %p73 = scmp.eq.s32.totalorder %s72, 0
    %s75 = sadd.s32 %s74, 1
    %s76 = scalar_select %p73, %s74, %s75
    %p79 = pneg %p73
    %p80 = scmp.eq.s32.totalorder %s12, 1
    %p81 = por %p79, %p80
    %p82 = scmp.ne.s32.totalorder %s74, %s77
    %p83 = scmp.eq.s32.totalorder %s12, 0
    %p84 = por %p82, %p83
    %p85 = scmp.ne.s32.totalorder %s74, %s77
    %p86 = scmp.eq.s32.totalorder %s17, 1
    %p87 = por %p85, %p86
    %p88 = scmp.ne.s32.totalorder %s77, %s78
    %p89 = scmp.eq.s32.totalorder %s17, 0
    %p90 = por %p88, %p89
    %p91 = scmp.ne.s32.totalorder %s77, %s78
    %p92 = scmp.eq.s32.totalorder %s18, 1
    %p93 = por %p91, %p92
    %p95 = scmp.ne.s32.totalorder %s78, %s94
    %p96 = scmp.eq.s32.totalorder %s18, 0
    %p97 = por %p95, %p96
    %p98 = scmp.le.s32.totalorder 1, %s12
    %p99 = scmp.lt.s32.totalorder %s12, 3
    %p100 = pnand %p98, %p99
    %p101 = pneg %p100
    // Predicated region
    $region9: #{_lambda_.4} parent=5 // pred_check
      _
    $region10: #{_lambda_.4} parent=5 // pred_check_branch
      %103 = sbr.rel (%p100) target = $region12
    $region11: #{_lambda_.4} parent=5 // pred_region
      %s104 = ssub.s32 %s12, 1
    $region12: #{_lambda_.4} parent=5 // pred_fallthru
      _
    %p105 = scmp.lt.s32.totalorder %s12, 2
    // Predicated region
    $region13: #{_lambda_.4} parent=5 // pred_check
      %p106 = pneg %p105
    $region14: #{_lambda_.4} parent=5 // pred_check_branch
      %108 = sbr.rel (%p106) target = $region16
    $region15: #{_lambda_.4} parent=5 // pred_region
      // Predicated region
      $region17: #{_lambda_.4} parent=15 // pred_check
        %p109 = pneg %p32
      $region18: #{_lambda_.4} parent=15 // pred_check_branch
        %111 = sbr.rel (%p109) target = $region20
      $region19: #{_lambda_.4} parent=15 // pred_region
        %s112 = smul.u32 16, %s12
        %s113 = ssub.s32 16, %s112
        %s114 = smul.u32 128, %s113
        %p115 = scmp.lt.s32.totalorder %s112, 15
        %s116 = scalar_select %p115, %s112, 15
        %s117 = smul.addr %s116, 8
        %s118 = scalar_lea.vmem %s0, %s117
        %s119 = smul.u32 16, %s12
        %s120 = ssub.s32 16, %s119
        %s121 = smul.u32 128, %s120
      $region20: #{_lambda_.4} parent=15 // pred_fallthru
        _
      // Predicated region
      $region21: #{_lambda_.4} parent=15 // pred_check
        %p122 = pneg %p58
      $region22: #{_lambda_.4} parent=15 // pred_check_branch
        %124 = sbr.rel (%p122) target = $region24
      $region23: #{_lambda_.4} parent=15 // pred_region
        %s125 = smul.u32 16, %s12
        %s126 = ssub.s32 16, %s125
        %s127 = smul.u32 16, %s126
        %p128 = scmp.lt.s32.totalorder %s125, 15
        %s129 = scalar_select %p128, %s125, 15
        %s130 = scalar_lea.vmem %s2, %s129
        %s131 = smul.u32 16, %s12
        %s132 = ssub.s32 16, %s131
        %s133 = smul.u32 16, %s132
      $region24: #{_lambda_.4} parent=15 // pred_fallthru
        _
    $region16: #{_lambda_.4} parent=5 // pred_fallthru
      _
    %p134 = scmp.le.s32.totalorder 1, %s12
    %p135 = scmp.lt.s32.totalorder %s12, 3
    %p136 = pnand %p134, %p135
    %p137 = pneg %p136
    // Predicated region
    $region25: #{_lambda_.4} parent=5 // pred_check
      _
    $region26: #{_lambda_.4} parent=5 // pred_check_branch
      %139 = sbr.rel (%p136) target = $region28
    $region27: #{_lambda_.4} parent=5 // pred_region
      #allocation12 [shape = 'u8[65536]{0}', space=vmem, size = 0x10000, dematerialized = true, scoped, tag = 'FusionAdapter Buffer %fusion.1 = f32[8,4096]{1,0:T(8,128)} fusion(%param_0.45, %param_1.72), kind=kLoop, calls=%fused_computation.10.clone, metadata={op_name="jit(<lambda>)/jit(_pad)/pad" stack_frame_id=88}']
      #allocation13 [shape = 'u8[8192]{0}', space=vmem, size = 0x2000, dematerialized = true, scoped, tag = 'FusionAdapter Buffer %fusion.4 = s32[1,4096]{1,0:T(1,128)} fusion(%param_2.73, %param_3.52), kind=kLoop, calls=%fused_computation.21.clone, metadata={op_name="jit(<lambda>)/jit(_pad)/pad" stack_frame_id=91}']
      %s140 = ssub.s32 %s12, 1
      %s141 = smul.u32 16, %s17
      %s142 = ssub.s32 16, %s141
      %s143 = smul.u32 128, %s142
      %p144 = scmp.lt.s32.totalorder %s141, 15
      %s145 = scalar_select %p144, %s141, 15
      %s146 = smul.addr %s145, 8
      %s147 = scalar_lea.vmem %s0, %s146
      %p148 = pneg %p38
      %p149 = pneg %p35
      %s150 = smul.u32 16, %s17
      %s151 = ssub.s32 16, %s150
      %s152 = smul.u32 16, %s151
      %p153 = scmp.lt.s32.totalorder %s150, 15
      %s154 = scalar_select %p153, %s150, 15
      %s155 = scalar_lea.vmem %s2, %s154
      %p156 = pneg %p64
      %p157 = pneg %p61
      %p158 = pneg %p90
      %p159 = pneg %p87
      %s160 = smul.u32 16, %s17
      %p161 = scmp.lt.s32.totalorder %s160, 31
      %s162 = scalar_select %p161, %s160, 31
      %s163 = scalar_lea.vmem %s4, %s162
      %s164 = smul.u32 16, %s17
      %s165 = ssub.s32 16, %s164
      %s166 = smul.u32 128, %s165
      %p167 = scmp.lt.s32.totalorder %s164, 15
      %s168 = scalar_select %p167, %s164, 15
      %s169 = smul.addr %s168, 8
      %s170 = scalar_lea.vmem %s0, %s169
      %s171 = smul.u32 16, %s17
      %s172 = ssub.s32 16, %s171
      %s173 = smul.u32 128, %s172
      %s174 = smul.u32 16, %s17
      %s175 = ssub.s32 16, %s174
      %s176 = smul.u32 16, %s175
      %p177 = scmp.lt.s32.totalorder %s174, 15
      %s178 = scalar_select %p177, %s174, 15
      %s179 = scalar_lea.vmem %s2, %s178
      %s180 = smul.u32 16, %s17
      %s181 = ssub.s32 16, %s180
      %s182 = smul.u32 16, %s181
      %s183 = smul.u32 16, %s17
      %p184 = scmp.lt.s32.totalorder %s183, 31
      %s185 = scalar_select %p184, %s183, 31
      %s186 = scalar_lea.vmem %s4, %s185
      %s187 = smul.u32 16, %s17
      %s188 = ssub.s32 15, %s171
      %p189 = scmp.lt.s32.totalorder %s188, 0
      %s190 = scalar_select %p189, 0, 255
      %v191 = vld [vmem:[%s170] sm:%s190]
      %s192 = ssub.s32 15, %s171
      %v193 = vstv %s192
      %vm194 = vcmp.lt.s32.totalorder %v193, 0
      %v195 = vsel %vm194, %v9, %v191
      %s197 = ssub.s32 256, 1
      %198 = vst [vmem:[#allocation12] sm:%s197] %v195
      %s199 = scalar_lea.vmem %s170, 8
      %s200 = sadd.s32 %s171, 1
      %s201 = ssub.s32 15, %s200
      %p202 = scmp.lt.s32.totalorder %s201, 0
      %s203 = scalar_select %p202, 0, 255
      %v204 = vld [vmem:[%s199] sm:%s203]
      %s205 = sadd.s32 %s171, 1
      %s206 = ssub.s32 15, %s205
      %v207 = vstv %s206
      %vm208 = vcmp.lt.s32.totalorder %v207, 0
      %v209 = vsel %vm208, %v9, %v204
      %s210 = scalar_lea.vmem [#allocation12], 8
      %s212 = ssub.s32 256, 1
      %213 = vst [vmem:[%s210] sm:%s212] %v209
      %s214 = scalar_lea.vmem %s170, 16
      %s215 = sadd.s32 %s171, 2
      %s216 = ssub.s32 15, %s215
      %p217 = scmp.lt.s32.totalorder %s216, 0
      %s218 = scalar_select %p217, 0, 255
      %v219 = vld [vmem:[%s214] sm:%s218]
      %s220 = sadd.s32 %s171, 2
      %s221 = ssub.s32 15, %s220
      %v222 = vstv %s221
      %vm223 = vcmp.lt.s32.totalorder %v222, 0
      %v224 = vsel %vm223, %v9, %v219
      %s225 = scalar_lea.vmem [#allocation12], 16
      %s227 = ssub.s32 256, 1
      %228 = vst [vmem:[%s225] sm:%s227] %v224
      %s229 = scalar_lea.vmem %s170, 24
      %s230 = sadd.s32 %s171, 3
      %s231 = ssub.s32 15, %s230
      %p232 = scmp.lt.s32.totalorder %s231, 0
      %s233 = scalar_select %p232, 0, 255
      %v234 = vld [vmem:[%s229] sm:%s233]
      %s235 = sadd.s32 %s171, 3
      %s236 = ssub.s32 15, %s235
      %v237 = vstv %s236
      %vm238 = vcmp.lt.s32.totalorder %v237, 0
      %v239 = vsel %vm238, %v9, %v234
      %s240 = scalar_lea.vmem [#allocation12], 24
      %s242 = ssub.s32 256, 1
      %243 = vst [vmem:[%s240] sm:%s242] %v239
      %s244 = scalar_lea.vmem %s170, 32
      %s245 = sadd.s32 %s171, 4
      %s246 = ssub.s32 15, %s245
      %p247 = scmp.lt.s32.totalorder %s246, 0
      %s248 = scalar_select %p247, 0, 255
      %v249 = vld [vmem:[%s244] sm:%s248]
      %s250 = sadd.s32 %s171, 4
      %s251 = ssub.s32 15, %s250
      %v252 = vstv %s251
      %vm253 = vcmp.lt.s32.totalorder %v252, 0
      %v254 = vsel %vm253, %v9, %v249
      %s255 = scalar_lea.vmem [#allocation12], 32
      %s257 = ssub.s32 256, 1
      %258 = vst [vmem:[%s255] sm:%s257] %v254
      %s259 = scalar_lea.vmem %s170, 40
      %s260 = sadd.s32 %s171, 5
      %s261 = ssub.s32 15, %s260
      %p262 = scmp.lt.s32.totalorder %s261, 0
      %s263 = scalar_select %p262, 0, 255
      %v264 = vld [vmem:[%s259] sm:%s263]
      %s265 = sadd.s32 %s171, 5
      %s266 = ssub.s32 15, %s265
      %v267 = vstv %s266
      %vm268 = vcmp.lt.s32.totalorder %v267, 0
      %v269 = vsel %vm268, %v9, %v264
      %s270 = scalar_lea.vmem [#allocation12], 40
      %s272 = ssub.s32 256, 1
      %273 = vst [vmem:[%s270] sm:%s272] %v269
      %s274 = scalar_lea.vmem %s170, 48
      %s275 = sadd.s32 %s171, 6
      %s276 = ssub.s32 15, %s275
      %p277 = scmp.lt.s32.totalorder %s276, 0
      %s278 = scalar_select %p277, 0, 255
      %v279 = vld [vmem:[%s274] sm:%s278]
      %s280 = sadd.s32 %s171, 6
      %s281 = ssub.s32 15, %s280
      %v282 = vstv %s281
      %vm283 = vcmp.lt.s32.totalorder %v282, 0
      %v284 = vsel %vm283, %v9, %v279
      %s285 = scalar_lea.vmem [#allocation12], 48
      %s287 = ssub.s32 256, 1
      %288 = vst [vmem:[%s285] sm:%s287] %v284
      %s289 = scalar_lea.vmem %s170, 56
      %s290 = sadd.s32 %s171, 7
      %s291 = ssub.s32 15, %s290
      %p292 = scmp.lt.s32.totalorder %s291, 0
      %s293 = scalar_select %p292, 0, 255
      %v294 = vld [vmem:[%s289] sm:%s293]
      %s295 = sadd.s32 %s171, 7
      %s296 = ssub.s32 15, %s295
      %v297 = vstv %s296
      %vm298 = vcmp.lt.s32.totalorder %v297, 0
      %v299 = vsel %vm298, %v9, %v294
      %s300 = scalar_lea.vmem [#allocation12], 56
      %s302 = ssub.s32 256, 1
      %303 = vst [vmem:[%s300] sm:%s302] %v299
      %s304 = scalar_lea.vmem %s170, 64
      %s305 = sadd.s32 %s171, 8
      %s306 = ssub.s32 15, %s305
      %p307 = scmp.lt.s32.totalorder %s306, 0
      %s308 = scalar_select %p307, 0, 255
      %v309 = vld [vmem:[%s304] sm:%s308]
      %s310 = sadd.s32 %s171, 8
      %s311 = ssub.s32 15, %s310
      %v312 = vstv %s311
      %vm313 = vcmp.lt.s32.totalorder %v312, 0
      %v314 = vsel %vm313, %v9, %v309
      %s315 = scalar_lea.vmem [#allocation12], 64
      %s317 = ssub.s32 256, 1
      %318 = vst [vmem:[%s315] sm:%s317] %v314
      %s319 = scalar_lea.vmem %s170, 72
      %s320 = sadd.s32 %s171, 9
      %s321 = ssub.s32 15, %s320
      %p322 = scmp.lt.s32.totalorder %s321, 0
      %s323 = scalar_select %p322, 0, 255
      %v324 = vld [vmem:[%s319] sm:%s323]
      %s325 = sadd.s32 %s171, 9
      %s326 = ssub.s32 15, %s325
      %v327 = vstv %s326
      %vm328 = vcmp.lt.s32.totalorder %v327, 0
      %v329 = vsel %vm328, %v9, %v324
      %s330 = scalar_lea.vmem [#allocation12], 72
      %s332 = ssub.s32 256, 1
      %333 = vst [vmem:[%s330] sm:%s332] %v329
      %s334 = scalar_lea.vmem %s170, 80
      %s335 = sadd.s32 %s171, 10
      %s336 = ssub.s32 15, %s335
      %p337 = scmp.lt.s32.totalorder %s336, 0
      %s338 = scalar_select %p337, 0, 255
      %v339 = vld [vmem:[%s334] sm:%s338]
      %s340 = sadd.s32 %s171, 10
      %s341 = ssub.s32 15, %s340
      %v342 = vstv %s341
      %vm343 = vcmp.lt.s32.totalorder %v342, 0
      %v344 = vsel %vm343, %v9, %v339
      %s345 = scalar_lea.vmem [#allocation12], 80
      %s347 = ssub.s32 256, 1
      %348 = vst [vmem:[%s345] sm:%s347] %v344
      %s349 = scalar_lea.vmem %s170, 88
      %s350 = sadd.s32 %s171, 11
      %s351 = ssub.s32 15, %s350
      %p352 = scmp.lt.s32.totalorder %s351, 0
      %s353 = scalar_select %p352, 0, 255
      %v354 = vld [vmem:[%s349] sm:%s353]
      %s355 = sadd.s32 %s171, 11
      %s356 = ssub.s32 15, %s355
      %v357 = vstv %s356
      %vm358 = vcmp.lt.s32.totalorder %v357, 0
      %v359 = vsel %vm358, %v9, %v354
      %s360 = scalar_lea.vmem [#allocation12], 88
      %s362 = ssub.s32 256, 1
      %363 = vst [vmem:[%s360] sm:%s362] %v359
      %s364 = scalar_lea.vmem %s170, 96
      %s365 = sadd.s32 %s171, 12
      %s366 = ssub.s32 15, %s365
      %p367 = scmp.lt.s32.totalorder %s366, 0
      %s368 = scalar_select %p367, 0, 255
      %v369 = vld [vmem:[%s364] sm:%s368]
      %s370 = sadd.s32 %s171, 12
      %s371 = ssub.s32 15, %s370
      %v372 = vstv %s371
      %vm373 = vcmp.lt.s32.totalorder %v372, 0
      %v374 = vsel %vm373, %v9, %v369
      %s375 = scalar_lea.vmem [#allocation12], 96
      %s377 = ssub.s32 256, 1
      %378 = vst [vmem:[%s375] sm:%s377] %v374
      %s379 = scalar_lea.vmem %s170, 104
      %s380 = sadd.s32 %s171, 13
      %s381 = ssub.s32 15, %s380
      %p382 = scmp.lt.s32.totalorder %s381, 0
      %s383 = scalar_select %p382, 0, 255
      %v384 = vld [vmem:[%s379] sm:%s383]
      %s385 = sadd.s32 %s171, 13
      %s386 = ssub.s32 15, %s385
      %v387 = vstv %s386
      %vm388 = vcmp.lt.s32.totalorder %v387, 0
      %v389 = vsel %vm388, %v9, %v384
      %s390 = scalar_lea.vmem [#allocation12], 104
      %s392 = ssub.s32 256, 1
      %393 = vst [vmem:[%s390] sm:%s392] %v389
      %s394 = scalar_lea.vmem %s170, 112
      %s395 = sadd.s32 %s171, 14
      %s396 = ssub.s32 15, %s395
      %p397 = scmp.lt.s32.totalorder %s396, 0
      %s398 = scalar_select %p397, 0, 255
      %v399 = vld [vmem:[%s394] sm:%s398]
      %s400 = sadd.s32 %s171, 14
      %s401 = ssub.s32 15, %s400
      %v402 = vstv %s401
      %vm403 = vcmp.lt.s32.totalorder %v402, 0
      %v404 = vsel %vm403, %v9, %v399
      %s405 = scalar_lea.vmem [#allocation12], 112
      %s407 = ssub.s32 256, 1
      %408 = vst [vmem:[%s405] sm:%s407] %v404
      %s409 = scalar_lea.vmem %s170, 120
      %s410 = sadd.s32 %s171, 15
      %s411 = ssub.s32 15, %s410
      %p412 = scmp.lt.s32.totalorder %s411, 0
      %s413 = scalar_select %p412, 0, 255
      %v414 = vld [vmem:[%s409] sm:%s413]
      %s415 = sadd.s32 %s171, 15
      %s416 = ssub.s32 15, %s415
      %v417 = vstv %s416
      %vm418 = vcmp.lt.s32.totalorder %v417, 0
      %v419 = vsel %vm418, %v9, %v414
      %s420 = scalar_lea.vmem [#allocation12], 120
      %s422 = ssub.s32 256, 1
      %423 = vst [vmem:[%s420] sm:%s422] %v419
      %s424 = ssub.s32 15, %s180
      %p425 = scmp.lt.s32.totalorder %s424, 0
      %s426 = scalar_select %p425, 0, 255
      %s427 = sand.u32 1, %s426
      %s428 = sand.u32 1, %s427
      %v429 = vld [vmem:[%s179] sm:%s428]
      %s430 = ssub.s32 15, %s180
      %v431 = vstv %s430
      %vm432 = vcmp.lt.s32.totalorder %v431, 0
      %v433 = vsel %vm432, %v10, %v429
      %v434 = vlaneseq
      %v435 = vshrl.u32 %v434, 7
      %vm437 = vcmp.lt.s32.totalorder %v435, 1
      %v438 = vsel %vm437, %v433, %v10
      %s440 = ssub.s32 2, 1
      %441 = vst [vmem:[#allocation13] sm:%s440] %v438
      %s442 = scalar_lea.vmem %s179, 1
      %s443 = sadd.s32 %s180, 1
      %s444 = ssub.s32 15, %s443
      %p445 = scmp.lt.s32.totalorder %s444, 0
      %s446 = scalar_select %p445, 0, 255
      %s447 = sand.u32 1, %s446
      %s448 = sand.u32 1, %s447
      %v449 = vld [vmem:[%s442] sm:%s448]
      %s450 = sadd.s32 %s180, 1
      %s451 = ssub.s32 15, %s450
      %v452 = vstv %s451
      %vm453 = vcmp.lt.s32.totalorder %v452, 0
      %v454 = vsel %vm453, %v10, %v449
      %v455 = vlaneseq
      %v456 = vshrl.u32 %v455, 7
      %vm458 = vcmp.lt.s32.totalorder %v456, 1
      %v459 = vsel %vm458, %v454, %v10
      %s460 = scalar_lea.vmem [#allocation13], 1
      %s462 = ssub.s32 2, 1
      %463 = vst [vmem:[%s460] sm:%s462] %v459
      %s464 = scalar_lea.vmem %s179, 2
      %s465 = sadd.s32 %s180, 2
      %s466 = ssub.s32 15, %s465
      %p467 = scmp.lt.s32.totalorder %s466, 0
      %s468 = scalar_select %p467, 0, 255
      %s469 = sand.u32 1, %s468
      %s470 = sand.u32 1, %s469
      %v471 = vld [vmem:[%s464] sm:%s470]
      %s472 = sadd.s32 %s180, 2
      %s473 = ssub.s32 15, %s472
      %v474 = vstv %s473
      %vm475 = vcmp.lt.s32.totalorder %v474, 0
      %v476 = vsel %vm475, %v10, %v471
      %v477 = vlaneseq
      %v478 = vshrl.u32 %v477, 7
      %vm480 = vcmp.lt.s32.totalorder %v478, 1
      %v481 = vsel %vm480, %v476, %v10
      %s482 = scalar_lea.vmem [#allocation13], 2
      %s484 = ssub.s32 2, 1
      %485 = vst [vmem:[%s482] sm:%s484] %v481
      %s486 = scalar_lea.vmem %s179, 3
      %s487 = sadd.s32 %s180, 3
      %s488 = ssub.s32 15, %s487
      %p489 = scmp.lt.s32.totalorder %s488, 0
      %s490 = scalar_select %p489, 0, 255
      %s491 = sand.u32 1, %s490
      %s492 = sand.u32 1, %s491
      %v493 = vld [vmem:[%s486] sm:%s492]
      %s494 = sadd.s32 %s180, 3
      %s495 = ssub.s32 15, %s494
      %v496 = vstv %s495
      %vm497 = vcmp.lt.s32.totalorder %v496, 0
      %v498 = vsel %vm497, %v10, %v493
      %v499 = vlaneseq
      %v500 = vshrl.u32 %v499, 7
      %vm502 = vcmp.lt.s32.totalorder %v500, 1
      %v503 = vsel %vm502, %v498, %v10
      %s504 = scalar_lea.vmem [#allocation13], 3
      %s506 = ssub.s32 2, 1
      %507 = vst [vmem:[%s504] sm:%s506] %v503
      %s508 = scalar_lea.vmem %s179, 4
      %s509 = sadd.s32 %s180, 4
      %s510 = ssub.s32 15, %s509
      %p511 = scmp.lt.s32.totalorder %s510, 0
      %s512 = scalar_select %p511, 0, 255
      %s513 = sand.u32 1, %s512
      %s514 = sand.u32 1, %s513
      %v515 = vld [vmem:[%s508] sm:%s514]
      %s516 = sadd.s32 %s180, 4
      %s517 = ssub.s32 15, %s516
      %v518 = vstv %s517
      %vm519 = vcmp.lt.s32.totalorder %v518, 0
      %v520 = vsel %vm519, %v10, %v515
      %v521 = vlaneseq
      %v522 = vshrl.u32 %v521, 7
      %vm524 = vcmp.lt.s32.totalorder %v522, 1
      %v525 = vsel %vm524, %v520, %v10
      %s526 = scalar_lea.vmem [#allocation13], 4
      %s528 = ssub.s32 2, 1
      %529 = vst [vmem:[%s526] sm:%s528] %v525
      %s530 = scalar_lea.vmem %s179, 5
      %s531 = sadd.s32 %s180, 5
      %s532 = ssub.s32 15, %s531
      %p533 = scmp.lt.s32.totalorder %s532, 0
      %s534 = scalar_select %p533, 0, 255
      %s535 = sand.u32 1, %s534
      %s536 = sand.u32 1, %s535
      %v537 = vld [vmem:[%s530] sm:%s536]
      %s538 = sadd.s32 %s180, 5
      %s539 = ssub.s32 15, %s538
      %v540 = vstv %s539
      %vm541 = vcmp.lt.s32.totalorder %v540, 0
      %v542 = vsel %vm541, %v10, %v537
      %v543 = vlaneseq
      %v544 = vshrl.u32 %v543, 7
      %vm546 = vcmp.lt.s32.totalorder %v544, 1
      %v547 = vsel %vm546, %v542, %v10
      %s548 = scalar_lea.vmem [#allocation13], 5
      %s550 = ssub.s32 2, 1
      %551 = vst [vmem:[%s548] sm:%s550] %v547
      %s552 = scalar_lea.vmem %s179, 6
      %s553 = sadd.s32 %s180, 6
      %s554 = ssub.s32 15, %s553
      %p555 = scmp.lt.s32.totalorder %s554, 0
      %s556 = scalar_select %p555, 0, 255
      %s557 = sand.u32 1, %s556
      %s558 = sand.u32 1, %s557
      %v559 = vld [vmem:[%s552] sm:%s558]
      %s560 = sadd.s32 %s180, 6
      %s561 = ssub.s32 15, %s560
      %v562 = vstv %s561
      %vm563 = vcmp.lt.s32.totalorder %v562, 0
      %v564 = vsel %vm563, %v10, %v559
      %v565 = vlaneseq
      %v566 = vshrl.u32 %v565, 7
      %vm568 = vcmp.lt.s32.totalorder %v566, 1
      %v569 = vsel %vm568, %v564, %v10
      %s570 = scalar_lea.vmem [#allocation13], 6
      %s572 = ssub.s32 2, 1
      %573 = vst [vmem:[%s570] sm:%s572] %v569
      %s574 = scalar_lea.vmem %s179, 7
      %s575 = sadd.s32 %s180, 7
      %s576 = ssub.s32 15, %s575
      %p577 = scmp.lt.s32.totalorder %s576, 0
      %s578 = scalar_select %p577, 0, 255
      %s579 = sand.u32 1, %s578
      %s580 = sand.u32 1, %s579
      %v581 = vld [vmem:[%s574] sm:%s580]
      %s582 = sadd.s32 %s180, 7
      %s583 = ssub.s32 15, %s582
      %v584 = vstv %s583
      %vm585 = vcmp.lt.s32.totalorder %v584, 0
      %v586 = vsel %vm585, %v10, %v581
      %v587 = vlaneseq
      %v588 = vshrl.u32 %v587, 7
      %vm590 = vcmp.lt.s32.totalorder %v588, 1
      %v591 = vsel %vm590, %v586, %v10
      %s592 = scalar_lea.vmem [#allocation13], 7
      %s594 = ssub.s32 2, 1
      %595 = vst [vmem:[%s592] sm:%s594] %v591
      %s596 = scalar_lea.vmem %s179, 8
      %s597 = sadd.s32 %s180, 8
      %s598 = ssub.s32 15, %s597
      %p599 = scmp.lt.s32.totalorder %s598, 0
      %s600 = scalar_select %p599, 0, 255
      %s601 = sand.u32 1, %s600
      %s602 = sand.u32 1, %s601
      %v603 = vld [vmem:[%s596] sm:%s602]
      %s604 = sadd.s32 %s180, 8
      %s605 = ssub.s32 15, %s604
      %v606 = vstv %s605
      %vm607 = vcmp.lt.s32.totalorder %v606, 0
      %v608 = vsel %vm607, %v10, %v603
      %v609 = vlaneseq
      %v610 = vshrl.u32 %v609, 7
      %vm612 = vcmp.lt.s32.totalorder %v610, 1
      %v613 = vsel %vm612, %v608, %v10
      %s614 = scalar_lea.vmem [#allocation13], 8
      %s616 = ssub.s32 2, 1
      %617 = vst [vmem:[%s614] sm:%s616] %v613
      %s618 = scalar_lea.vmem %s179, 9
      %s619 = sadd.s32 %s180, 9
      %s620 = ssub.s32 15, %s619
      %p621 = scmp.lt.s32.totalorder %s620, 0
      %s622 = scalar_select %p621, 0, 255
      %s623 = sand.u32 1, %s622
      %s624 = sand.u32 1, %s623
      %v625 = vld [vmem:[%s618] sm:%s624]
      %s626 = sadd.s32 %s180, 9
      %s627 = ssub.s32 15, %s626
      %v628 = vstv %s627
      %vm629 = vcmp.lt.s32.totalorder %v628, 0
      %v630 = vsel %vm629, %v10, %v625
      %v631 = vlaneseq
      %v632 = vshrl.u32 %v631, 7
      %vm634 = vcmp.lt.s32.totalorder %v632, 1
      %v635 = vsel %vm634, %v630, %v10
      %s636 = scalar_lea.vmem [#allocation13], 9
      %s638 = ssub.s32 2, 1
      %639 = vst [vmem:[%s636] sm:%s638] %v635
      %s640 = scalar_lea.vmem %s179, 10
      %s641 = sadd.s32 %s180, 10
      %s642 = ssub.s32 15, %s641
      %p643 = scmp.lt.s32.totalorder %s642, 0
      %s644 = scalar_select %p643, 0, 255
      %s645 = sand.u32 1, %s644
      %s646 = sand.u32 1, %s645
      %v647 = vld [vmem:[%s640] sm:%s646]
      %s648 = sadd.s32 %s180, 10
      %s649 = ssub.s32 15, %s648
      %v650 = vstv %s649
      %vm651 = vcmp.lt.s32.totalorder %v650, 0
      %v652 = vsel %vm651, %v10, %v647
      %v653 = vlaneseq
      %v654 = vshrl.u32 %v653, 7
      %vm656 = vcmp.lt.s32.totalorder %v654, 1
      %v657 = vsel %vm656, %v652, %v10
      %s658 = scalar_lea.vmem [#allocation13], 10
      %s660 = ssub.s32 2, 1
      %661 = vst [vmem:[%s658] sm:%s660] %v657
      %s662 = scalar_lea.vmem %s179, 11
      %s663 = sadd.s32 %s180, 11
      %s664 = ssub.s32 15, %s663
      %p665 = scmp.lt.s32.totalorder %s664, 0
      %s666 = scalar_select %p665, 0, 255
      %s667 = sand.u32 1, %s666
      %s668 = sand.u32 1, %s667
      %v669 = vld [vmem:[%s662] sm:%s668]
      %s670 = sadd.s32 %s180, 11
      %s671 = ssub.s32 15, %s670
      %v672 = vstv %s671
      %vm673 = vcmp.lt.s32.totalorder %v672, 0
      %v674 = vsel %vm673, %v10, %v669
      %v675 = vlaneseq
      %v676 = vshrl.u32 %v675, 7
      %vm678 = vcmp.lt.s32.totalorder %v676, 1
      %v679 = vsel %vm678, %v674, %v10
      %s680 = scalar_lea.vmem [#allocation13], 11
      %s682 = ssub.s32 2, 1
      %683 = vst [vmem:[%s680] sm:%s682] %v679
      %s684 = scalar_lea.vmem %s179, 12
      %s685 = sadd.s32 %s180, 12
      %s686 = ssub.s32 15, %s685
      %p687 = scmp.lt.s32.totalorder %s686, 0
      %s688 = scalar_select %p687, 0, 255
      %s689 = sand.u32 1, %s688
      %s690 = sand.u32 1, %s689
      %v691 = vld [vmem:[%s684] sm:%s690]
      %s692 = sadd.s32 %s180, 12
      %s693 = ssub.s32 15, %s692
      %v694 = vstv %s693
      %vm695 = vcmp.lt.s32.totalorder %v694, 0
      %v696 = vsel %vm695, %v10, %v691
      %v697 = vlaneseq
      %v698 = vshrl.u32 %v697, 7
      %vm700 = vcmp.lt.s32.totalorder %v698, 1
      %v701 = vsel %vm700, %v696, %v10
      %s702 = scalar_lea.vmem [#allocation13], 12
      %s704 = ssub.s32 2, 1
      %705 = vst [vmem:[%s702] sm:%s704] %v701
      %s706 = scalar_lea.vmem %s179, 13
      %s707 = sadd.s32 %s180, 13
      %s708 = ssub.s32 15, %s707
      %p709 = scmp.lt.s32.totalorder %s708, 0
      %s710 = scalar_select %p709, 0, 255
      %s711 = sand.u32 1, %s710
      %s712 = sand.u32 1, %s711
      %v713 = vld [vmem:[%s706] sm:%s712]
      %s714 = sadd.s32 %s180, 13
      %s715 = ssub.s32 15, %s714
      %v716 = vstv %s715
      %vm717 = vcmp.lt.s32.totalorder %v716, 0
      %v718 = vsel %vm717, %v10, %v713
      %v719 = vlaneseq
      %v720 = vshrl.u32 %v719, 7
      %vm722 = vcmp.lt.s32.totalorder %v720, 1
      %v723 = vsel %vm722, %v718, %v10
      %s724 = scalar_lea.vmem [#allocation13], 13
      %s726 = ssub.s32 2, 1
      %727 = vst [vmem:[%s724] sm:%s726] %v723
      %s728 = scalar_lea.vmem %s179, 14
      %s729 = sadd.s32 %s180, 14
      %s730 = ssub.s32 15, %s729
      %p731 = scmp.lt.s32.totalorder %s730, 0
      %s732 = scalar_select %p731, 0, 255
      %s733 = sand.u32 1, %s732
      %s734 = sand.u32 1, %s733
      %v735 = vld [vmem:[%s728] sm:%s734]
      %s736 = sadd.s32 %s180, 14
      %s737 = ssub.s32 15, %s736
      %v738 = vstv %s737
      %vm739 = vcmp.lt.s32.totalorder %v738, 0
      %v740 = vsel %vm739, %v10, %v735
      %v741 = vlaneseq
      %v742 = vshrl.u32 %v741, 7
      %vm744 = vcmp.lt.s32.totalorder %v742, 1
      %v745 = vsel %vm744, %v740, %v10
      %s746 = scalar_lea.vmem [#allocation13], 14
      %s748 = ssub.s32 2, 1
      %749 = vst [vmem:[%s746] sm:%s748] %v745
      %s750 = scalar_lea.vmem %s179, 15
      %s751 = sadd.s32 %s180, 15
      %s752 = ssub.s32 15, %s751
      %p753 = scmp.lt.s32.totalorder %s752, 0
      %s754 = scalar_select %p753, 0, 255
      %s755 = sand.u32 1, %s754
      %s756 = sand.u32 1, %s755
      %v757 = vld [vmem:[%s750] sm:%s756]
      %s758 = sadd.s32 %s180, 15
      %s759 = ssub.s32 15, %s758
      %v760 = vstv %s759
      %vm761 = vcmp.lt.s32.totalorder %v760, 0
      %v762 = vsel %vm761, %v10, %v757
      %v763 = vlaneseq
      %v764 = vshrl.u32 %v763, 7
      %vm766 = vcmp.lt.s32.totalorder %v764, 1
      %v767 = vsel %vm766, %v762, %v10
      %s768 = scalar_lea.vmem [#allocation13], 15
      %s770 = ssub.s32 2, 1
      %771 = vst [vmem:[%s768] sm:%s770] %v767
      %v772 = vld [vmem:[#allocation12] sm:$0xff]
      %v773 = vld [vmem:[#allocation12 + $0x8] sm:$0xff]
      %v774 = vld [vmem:[#allocation12 + $0x10] sm:$0xff]
      %v775 = vld [vmem:[#allocation12 + $0x18] sm:$0xff]
      %v776 = vld [vmem:[#allocation12 + $0x20] sm:$0xff]
      %v777 = vld [vmem:[#allocation12 + $0x28] sm:$0xff]
      %v778 = vld [vmem:[#allocation12 + $0x30] sm:$0xff]
      %v779 = vld [vmem:[#allocation12 + $0x38] sm:$0xff]
      %v780 = vld [vmem:[#allocation12 + $0x40] sm:$0xff]
      %v781 = vld [vmem:[#allocation12 + $0x48] sm:$0xff]
      %v782 = vld [vmem:[#allocation12 + $0x50] sm:$0xff]
      %v783 = vld [vmem:[#allocation12 + $0x58] sm:$0xff]
      %v784 = vld [vmem:[#allocation12 + $0x60] sm:$0xff]
      %v785 = vld [vmem:[#allocation12 + $0x68] sm:$0xff]
      %v786 = vld [vmem:[#allocation12 + $0x70] sm:$0xff]
      %v787 = vld [vmem:[#allocation12 + $0x78] sm:$0xff]
      %v788 = vld [vmem:[#allocation13] sm:$0xff]
      %v789 = vld [vmem:[#allocation13 + $0x8] sm:$0xff]
      %v790 = vrot.slane %v772, 4
      %v791 = vmax.f32 %v772, %v790
      %v792 = vrot.slane %v791, 2
      %v793 = vmax.f32 %v791, %v792
      %v794 = vrot.slane %v793, 1
      %v795 = vmax.f32 %v793, %v794
      %v796 = vrot.slane %v773, 4
      %v797 = vmax.f32 %v773, %v796
      %v798 = vrot.slane %v797, 2
      %v799 = vmax.f32 %v797, %v798
      %v800 = vrot.slane %v799, 1
      %v801 = vmax.f32 %v799, %v800
      %v802 = vrot.slane %v774, 4
      %v803 = vmax.f32 %v774, %v802
      %v804 = vrot.slane %v803, 2
      %v805 = vmax.f32 %v803, %v804
      %v806 = vrot.slane %v805, 1
      %v807 = vmax.f32 %v805, %v806
      %v808 = vrot.slane %v775, 4
      %v809 = vmax.f32 %v775, %v808
      %v810 = vrot.slane %v809, 2
      %v811 = vmax.f32 %v809, %v810
      %v812 = vrot.slane %v811, 1
      %v813 = vmax.f32 %v811, %v812
      %v814 = vrot.slane %v776, 4
      %v815 = vmax.f32 %v776, %v814
      %v816 = vrot.slane %v815, 2
      %v817 = vmax.f32 %v815, %v816
      %v818 = vrot.slane %v817, 1
      %v819 = vmax.f32 %v817, %v818
      %v820 = vrot.slane %v777, 4
      %v821 = vmax.f32 %v777, %v820
      %v822 = vrot.slane %v821, 2
      %v823 = vmax.f32 %v821, %v822
      %v824 = vrot.slane %v823, 1
      %v825 = vmax.f32 %v823, %v824
      %v826 = vrot.slane %v778, 4
      %v827 = vmax.f32 %v778, %v826
      %v828 = vrot.slane %v827, 2
      %v829 = vmax.f32 %v827, %v828
      %v830 = vrot.slane %v829, 1
      %v831 = vmax.f32 %v829, %v830
      %v832 = vrot.slane %v779, 4
      %v833 = vmax.f32 %v779, %v832
      %v834 = vrot.slane %v833, 2
      %v835 = vmax.f32 %v833, %v834
      %v836 = vrot.slane %v835, 1
      %v837 = vmax.f32 %v835, %v836
      %v838 = vrot.slane %v780, 4
      %v839 = vmax.f32 %v780, %v838
      %v840 = vrot.slane %v839, 2
      %v841 = vmax.f32 %v839, %v840
      %v842 = vrot.slane %v841, 1
      %v843 = vmax.f32 %v841, %v842
      %v844 = vrot.slane %v781, 4
      %v845 = vmax.f32 %v781, %v844
      %v846 = vrot.slane %v845, 2
      %v847 = vmax.f32 %v845, %v846
      %v848 = vrot.slane %v847, 1
      %v849 = vmax.f32 %v847, %v848
      %v850 = vrot.slane %v782, 4
      %v851 = vmax.f32 %v782, %v850
      %v852 = vrot.slane %v851, 2
      %v853 = vmax.f32 %v851, %v852
      %v854 = vrot.slane %v853, 1
      %v855 = vmax.f32 %v853, %v854
      %v856 = vrot.slane %v783, 4
      %v857 = vmax.f32 %v783, %v856
      %v858 = vrot.slane %v857, 2
      %v859 = vmax.f32 %v857, %v858
      %v860 = vrot.slane %v859, 1
      %v861 = vmax.f32 %v859, %v860
      %v862 = vrot.slane %v784, 4
      %v863 = vmax.f32 %v784, %v862
      %v864 = vrot.slane %v863, 2
      %v865 = vmax.f32 %v863, %v864
      %v866 = vrot.slane %v865, 1
      %v867 = vmax.f32 %v865, %v866
      %v868 = vrot.slane %v785, 4
      %v869 = vmax.f32 %v785, %v868
      %v870 = vrot.slane %v869, 2
      %v871 = vmax.f32 %v869, %v870
      %v872 = vrot.slane %v871, 1
      %v873 = vmax.f32 %v871, %v872
      %v874 = vrot.slane %v786, 4
      %v875 = vmax.f32 %v786, %v874
      %v876 = vrot.slane %v875, 2
      %v877 = vmax.f32 %v875, %v876
      %v878 = vrot.slane %v877, 1
      %v879 = vmax.f32 %v877, %v878
      %v880 = vrot.slane %v787, 4
      %v881 = vmax.f32 %v787, %v880
      %v882 = vrot.slane %v881, 2
      %v883 = vmax.f32 %v881, %v882
      %v884 = vrot.slane %v883, 1
      %v885 = vmax.f32 %v883, %v884
      %v886 = vsub.f32 %v772, %v795
      %v887 = vsub.f32 %v773, %v801
      %v888 = vsub.f32 %v774, %v807
      %v889 = vsub.f32 %v775, %v813
      %v890 = vsub.f32 %v776, %v819
      %v891 = vsub.f32 %v777, %v825
      %v892 = vsub.f32 %v778, %v831
      %v893 = vsub.f32 %v779, %v837
      %v894 = vsub.f32 %v780, %v843
      %v895 = vsub.f32 %v781, %v849
      %v896 = vsub.f32 %v782, %v855
      %v897 = vsub.f32 %v783, %v861
      %v898 = vsub.f32 %v784, %v867
      %v899 = vsub.f32 %v785, %v873
      %v900 = vsub.f32 %v786, %v879
      %v901 = vsub.f32 %v787, %v885
      %v902 = vmul.f32 %v886, 1.442695
      %v903 = vpow.pop %v902
      %v904 = vmul.f32 %v887, 1.442695
      %v905 = vpow.pop %v904
      %v906 = vmul.f32 %v888, 1.442695
      %v907 = vpow.pop %v906
      %v908 = vmul.f32 %v889, 1.442695
      %v909 = vpow.pop %v908
      %v910 = vmul.f32 %v890, 1.442695
      %v911 = vpow.pop %v910
      %v912 = vmul.f32 %v891, 1.442695
      %v913 = vpow.pop %v912
      %v914 = vmul.f32 %v892, 1.442695
      %v915 = vpow.pop %v914
      %v916 = vmul.f32 %v893, 1.442695
      %v917 = vpow.pop %v916
      %v918 = vmul.f32 %v894, 1.442695
      %v919 = vpow.pop %v918
      %v920 = vmul.f32 %v895, 1.442695
      %v921 = vpow.pop %v920
      %v922 = vmul.f32 %v896, 1.442695
      %v923 = vpow.pop %v922
      %v924 = vmul.f32 %v897, 1.442695
      %v925 = vpow.pop %v924
      %v926 = vmul.f32 %v898, 1.442695
      %v927 = vpow.pop %v926
      %v928 = vmul.f32 %v899, 1.442695
      %v929 = vpow.pop %v928
      %v930 = vmul.f32 %v900, 1.442695
      %v931 = vpow.pop %v930
      %v932 = vmul.f32 %v901, 1.442695
      %v933 = vpow.pop %v932
      %v934 = vrot.slane %v903, 4
      %v935 = vadd.f32 %v903, %v934
      %v936 = vrot.slane %v935, 2
      %v937 = vadd.f32 %v935, %v936
      %v938 = vrot.slane %v937, 1
      %v939 = vadd.f32 %v937, %v938
      %v940 = vrot.slane %v905, 4
      %v941 = vadd.f32 %v905, %v940
      %v942 = vrot.slane %v941, 2
      %v943 = vadd.f32 %v941, %v942
      %v944 = vrot.slane %v943, 1
      %v945 = vadd.f32 %v943, %v944
      %v946 = vrot.slane %v907, 4
      %v947 = vadd.f32 %v907, %v946
      %v948 = vrot.slane %v947, 2
      %v949 = vadd.f32 %v947, %v948
      %v950 = vrot.slane %v949, 1
      %v951 = vadd.f32 %v949, %v950
      %v952 = vrot.slane %v909, 4
      %v953 = vadd.f32 %v909, %v952
      %v954 = vrot.slane %v953, 2
      %v955 = vadd.f32 %v953, %v954
      %v956 = vrot.slane %v955, 1
      %v957 = vadd.f32 %v955, %v956
      %v958 = vrot.slane %v911, 4
      %v959 = vadd.f32 %v911, %v958
      %v960 = vrot.slane %v959, 2
      %v961 = vadd.f32 %v959, %v960
      %v962 = vrot.slane %v961, 1
      %v963 = vadd.f32 %v961, %v962
      %v964 = vrot.slane %v913, 4
      %v965 = vadd.f32 %v913, %v964
      %v966 = vrot.slane %v965, 2
      %v967 = vadd.f32 %v965, %v966
      %v968 = vrot.slane %v967, 1
      %v969 = vadd.f32 %v967, %v968
      %v970 = vrot.slane %v915, 4
      %v971 = vadd.f32 %v915, %v970
      %v972 = vrot.slane %v971, 2
      %v973 = vadd.f32 %v971, %v972
      %v974 = vrot.slane %v973, 1
      %v975 = vadd.f32 %v973, %v974
      %v976 = vrot.slane %v917, 4
      %v977 = vadd.f32 %v917, %v976
      %v978 = vrot.slane %v977, 2
      %v979 = vadd.f32 %v977, %v978
      %v980 = vrot.slane %v979, 1
      %v981 = vadd.f32 %v979, %v980
      %v982 = vrot.slane %v919, 4
      %v983 = vadd.f32 %v919, %v982
      %v984 = vrot.slane %v983, 2
      %v985 = vadd.f32 %v983, %v984
      %v986 = vrot.slane %v985, 1
      %v987 = vadd.f32 %v985, %v986
      %v988 = vrot.slane %v921, 4
      %v989 = vadd.f32 %v921, %v988
      %v990 = vrot.slane %v989, 2
      %v991 = vadd.f32 %v989, %v990
      %v992 = vrot.slane %v991, 1
      %v993 = vadd.f32 %v991, %v992
      %v994 = vrot.slane %v923, 4
      %v995 = vadd.f32 %v923, %v994
      %v996 = vrot.slane %v995, 2
      %v997 = vadd.f32 %v995, %v996
      %v998 = vrot.slane %v997, 1
      %v999 = vadd.f32 %v997, %v998
      %v1000 = vrot.slane %v925, 4
      %v1001 = vadd.f32 %v925, %v1000
      %v1002 = vrot.slane %v1001, 2
      %v1003 = vadd.f32 %v1001, %v1002
      %v1004 = vrot.slane %v1003, 1
      %v1005 = vadd.f32 %v1003, %v1004
      %v1006 = vrot.slane %v927, 4
      %v1007 = vadd.f32 %v927, %v1006
      %v1008 = vrot.slane %v1007, 2
      %v1009 = vadd.f32 %v1007, %v1008
      %v1010 = vrot.slane %v1009, 1
      %v1011 = vadd.f32 %v1009, %v1010
      %v1012 = vrot.slane %v929, 4
      %v1013 = vadd.f32 %v929, %v1012
      %v1014 = vrot.slane %v1013, 2
      %v1015 = vadd.f32 %v1013, %v1014
      %v1016 = vrot.slane %v1015, 1
      %v1017 = vadd.f32 %v1015, %v1016
      %v1018 = vrot.slane %v931, 4
      %v1019 = vadd.f32 %v931, %v1018
      %v1020 = vrot.slane %v1019, 2
      %v1021 = vadd.f32 %v1019, %v1020
      %v1022 = vrot.slane %v1021, 1
      %v1023 = vadd.f32 %v1021, %v1022
      %v1024 = vrot.slane %v933, 4
      %v1025 = vadd.f32 %v933, %v1024
      %v1026 = vrot.slane %v1025, 2
      %v1027 = vadd.f32 %v1025, %v1026
      %v1028 = vrot.slane %v1027, 1
      %v1029 = vadd.f32 %v1027, %v1028
      %v1030 = vlog2.pop %v939
      %v1031 = vmul.f32 %v1030, 0.6931472
      %v1032 = vlog2.pop %v945
      %v1033 = vmul.f32 %v1032, 0.6931472
      %v1034 = vlog2.pop %v951
      %v1035 = vmul.f32 %v1034, 0.6931472
      %v1036 = vlog2.pop %v957
      %v1037 = vmul.f32 %v1036, 0.6931472
      %v1038 = vlog2.pop %v963
      %v1039 = vmul.f32 %v1038, 0.6931472
      %v1040 = vlog2.pop %v969
      %v1041 = vmul.f32 %v1040, 0.6931472
      %v1042 = vlog2.pop %v975
      %v1043 = vmul.f32 %v1042, 0.6931472
      %v1044 = vlog2.pop %v981
      %v1045 = vmul.f32 %v1044, 0.6931472
      %v1046 = vlog2.pop %v987
      %v1047 = vmul.f32 %v1046, 0.6931472
      %v1048 = vlog2.pop %v993
      %v1049 = vmul.f32 %v1048, 0.6931472
      %v1050 = vlog2.pop %v999
      %v1051 = vmul.f32 %v1050, 0.6931472
      %v1052 = vlog2.pop %v1005
      %v1053 = vmul.f32 %v1052, 0.6931472
      %v1054 = vlog2.pop %v1011
      %v1055 = vmul.f32 %v1054, 0.6931472
      %v1056 = vlog2.pop %v1017
      %v1057 = vmul.f32 %v1056, 0.6931472
      %v1058 = vlog2.pop %v1023
      %v1059 = vmul.f32 %v1058, 0.6931472
      %v1060 = vlog2.pop %v1029
      %v1061 = vmul.f32 %v1060, 0.6931472
      %v1062 = vadd.f32 %v1031, %v795
      %v1063 = vadd.f32 %v1033, %v801
      %v1064 = vadd.f32 %v1035, %v807
      %v1065 = vadd.f32 %v1037, %v813
      %v1066 = vadd.f32 %v1039, %v819
      %v1067 = vadd.f32 %v1041, %v825
      %v1068 = vadd.f32 %v1043, %v831
      %v1069 = vadd.f32 %v1045, %v837
      %v1070 = vadd.f32 %v1047, %v843
      %v1071 = vadd.f32 %v1049, %v849
      %v1072 = vadd.f32 %v1051, %v855
      %v1073 = vadd.f32 %v1053, %v861
      %v1074 = vadd.f32 %v1055, %v867
      %v1075 = vadd.f32 %v1057, %v873
      %v1076 = vadd.f32 %v1059, %v879
      %v1077 = vadd.f32 %v1061, %v885
      %v1078 = vlaneseq
      %v1079 = vshrl.u32 %v1078, 7
      %v1080 = vlaneseq
      %v1081 = vshrl.u32 %v1080, 7
      %v1082 = vsub.s32 0, %v1081
      %v1083 = vrot.slane %v788, %v1082
      %v1084 = vlaneseq
      %v1085 = vshrl.u32 %v1084, 7
      %v1086 = vsub.s32 1, %v1085
      %v1087 = vrot.slane %v788, %v1086
      %v1088 = vlaneseq
      %v1089 = vshrl.u32 %v1088, 7
      %v1090 = vsub.s32 2, %v1089
      %v1091 = vrot.slane %v788, %v1090
      %v1092 = vlaneseq
      %v1093 = vshrl.u32 %v1092, 7
      %v1094 = vsub.s32 3, %v1093
      %v1095 = vrot.slane %v788, %v1094
      %v1096 = vlaneseq
      %v1097 = vshrl.u32 %v1096, 7
      %v1098 = vsub.s32 4, %v1097
      %v1099 = vrot.slane %v788, %v1098
      %v1100 = vlaneseq
      %v1101 = vshrl.u32 %v1100, 7
      %v1102 = vsub.s32 5, %v1101
      %v1103 = vrot.slane %v788, %v1102
      %v1104 = vlaneseq
      %v1105 = vshrl.u32 %v1104, 7
      %v1106 = vsub.s32 6, %v1105
      %v1107 = vrot.slane %v788, %v1106
      %v1108 = vlaneseq
      %v1109 = vshrl.u32 %v1108, 7
      %v1110 = vsub.s32 7, %v1109
      %v1111 = vrot.slane %v788, %v1110
      %v1112 = vlaneseq
      %v1113 = vshrl.u32 %v1112, 7
      %v1114 = vsub.s32 0, %v1113
      %v1115 = vrot.slane %v789, %v1114
      %v1116 = vlaneseq
      %v1117 = vshrl.u32 %v1116, 7
      %v1118 = vsub.s32 1, %v1117
      %v1119 = vrot.slane %v789, %v1118
      %v1120 = vlaneseq
      %v1121 = vshrl.u32 %v1120, 7
      %v1122 = vsub.s32 2, %v1121
      %v1123 = vrot.slane %v789, %v1122
      %v1124 = vlaneseq
      %v1125 = vshrl.u32 %v1124, 7
      %v1126 = vsub.s32 3, %v1125
      %v1127 = vrot.slane %v789, %v1126
      %v1128 = vlaneseq
      %v1129 = vshrl.u32 %v1128, 7
      %v1130 = vsub.s32 4, %v1129
      %v1131 = vrot.slane %v789, %v1130
      %v1132 = vlaneseq
      %v1133 = vshrl.u32 %v1132, 7
      %v1134 = vsub.s32 5, %v1133
      %v1135 = vrot.slane %v789, %v1134
      %v1136 = vlaneseq
      %v1137 = vshrl.u32 %v1136, 7
      %v1138 = vsub.s32 6, %v1137
      %v1139 = vrot.slane %v789, %v1138
      %v1140 = vlaneseq
      %v1141 = vshrl.u32 %v1140, 7
      %v1142 = vsub.s32 7, %v1141
      %v1143 = vrot.slane %v789, %v1142
      %vm1144 = vcmp.eq.s32.totalorder %v1079, %v1083
      %vm1145 = vcmp.eq.s32.totalorder %v1079, %v1087
      %vm1146 = vcmp.eq.s32.totalorder %v1079, %v1091
      %vm1147 = vcmp.eq.s32.totalorder %v1079, %v1095
      %vm1148 = vcmp.eq.s32.totalorder %v1079, %v1099
      %vm1149 = vcmp.eq.s32.totalorder %v1079, %v1103
      %vm1150 = vcmp.eq.s32.totalorder %v1079, %v1107
      %vm1151 = vcmp.eq.s32.totalorder %v1079, %v1111
      %vm1152 = vcmp.eq.s32.totalorder %v1079, %v1115
      %vm1153 = vcmp.eq.s32.totalorder %v1079, %v1119
      %vm1154 = vcmp.eq.s32.totalorder %v1079, %v1123
      %vm1155 = vcmp.eq.s32.totalorder %v1079, %v1127
      %vm1156 = vcmp.eq.s32.totalorder %v1079, %v1131
      %vm1157 = vcmp.eq.s32.totalorder %v1079, %v1135
      %vm1158 = vcmp.eq.s32.totalorder %v1079, %v1139
      %vm1159 = vcmp.eq.s32.totalorder %v1079, %v1143
      %v1160 = vsel %vm1144, %v772, 0.0
      %v1161 = vsel %vm1145, %v773, 0.0
      %v1162 = vsel %vm1146, %v774, 0.0
      %v1163 = vsel %vm1147, %v775, 0.0
      %v1164 = vsel %vm1148, %v776, 0.0
      %v1165 = vsel %vm1149, %v777, 0.0
      %v1166 = vsel %vm1150, %v778, 0.0
      %v1167 = vsel %vm1151, %v779, 0.0
      %v1168 = vsel %vm1152, %v780, 0.0
      %v1169 = vsel %vm1153, %v781, 0.0
      %v1170 = vsel %vm1154, %v782, 0.0
      %v1171 = vsel %vm1155, %v783, 0.0
      %v1172 = vsel %vm1156, %v784, 0.0
      %v1173 = vsel %vm1157, %v785, 0.0
      %v1174 = vsel %vm1158, %v786, 0.0
      %v1175 = vsel %vm1159, %v787, 0.0
      %v1176 = vrot.slane %v1160, 4
      %v1177 = vadd.f32 %v1160, %v1176
      %v1178 = vrot.slane %v1177, 2
      %v1179 = vadd.f32 %v1177, %v1178
      %v1180 = vrot.slane %v1179, 1
      %v1181 = vadd.f32 %v1179, %v1180
      %v1182 = vrot.slane %v1161, 4
      %v1183 = vadd.f32 %v1161, %v1182
      %v1184 = vrot.slane %v1183, 2
      %v1185 = vadd.f32 %v1183, %v1184
      %v1186 = vrot.slane %v1185, 1
      %v1187 = vadd.f32 %v1185, %v1186
      %v1188 = vrot.slane %v1162, 4
      %v1189 = vadd.f32 %v1162, %v1188
      %v1190 = vrot.slane %v1189, 2
      %v1191 = vadd.f32 %v1189, %v1190
      %v1192 = vrot.slane %v1191, 1
      %v1193 = vadd.f32 %v1191, %v1192
      %v1194 = vrot.slane %v1163, 4
      %v1195 = vadd.f32 %v1163, %v1194
      %v1196 = vrot.slane %v1195, 2
      %v1197 = vadd.f32 %v1195, %v1196
      %v1198 = vrot.slane %v1197, 1
      %v1199 = vadd.f32 %v1197, %v1198
      %v1200 = vrot.slane %v1164, 4
      %v1201 = vadd.f32 %v1164, %v1200
      %v1202 = vrot.slane %v1201, 2
      %v1203 = vadd.f32 %v1201, %v1202
      %v1204 = vrot.slane %v1203, 1
      %v1205 = vadd.f32 %v1203, %v1204
      %v1206 = vrot.slane %v1165, 4
      %v1207 = vadd.f32 %v1165, %v1206
      %v1208 = vrot.slane %v1207, 2
      %v1209 = vadd.f32 %v1207, %v1208
      %v1210 = vrot.slane %v1209, 1
      %v1211 = vadd.f32 %v1209, %v1210
      %v1212 = vrot.slane %v1166, 4
      %v1213 = vadd.f32 %v1166, %v1212
      %v1214 = vrot.slane %v1213, 2
      %v1215 = vadd.f32 %v1213, %v1214
      %v1216 = vrot.slane %v1215, 1
      %v1217 = vadd.f32 %v1215, %v1216
      %v1218 = vrot.slane %v1167, 4
      %v1219 = vadd.f32 %v1167, %v1218
      %v1220 = vrot.slane %v1219, 2
      %v1221 = vadd.f32 %v1219, %v1220
      %v1222 = vrot.slane %v1221, 1
      %v1223 = vadd.f32 %v1221, %v1222
      %v1224 = vrot.slane %v1168, 4
      %v1225 = vadd.f32 %v1168, %v1224
      %v1226 = vrot.slane %v1225, 2
      %v1227 = vadd.f32 %v1225, %v1226
      %v1228 = vrot.slane %v1227, 1
      %v1229 = vadd.f32 %v1227, %v1228
      %v1230 = vrot.slane %v1169, 4
      %v1231 = vadd.f32 %v1169, %v1230
      %v1232 = vrot.slane %v1231, 2
      %v1233 = vadd.f32 %v1231, %v1232
      %v1234 = vrot.slane %v1233, 1
      %v1235 = vadd.f32 %v1233, %v1234
      %v1236 = vrot.slane %v1170, 4
      %v1237 = vadd.f32 %v1170, %v1236
      %v1238 = vrot.slane %v1237, 2
      %v1239 = vadd.f32 %v1237, %v1238
      %v1240 = vrot.slane %v1239, 1
      %v1241 = vadd.f32 %v1239, %v1240
      %v1242 = vrot.slane %v1171, 4
      %v1243 = vadd.f32 %v1171, %v1242
      %v1244 = vrot.slane %v1243, 2
      %v1245 = vadd.f32 %v1243, %v1244
      %v1246 = vrot.slane %v1245, 1
      %v1247 = vadd.f32 %v1245, %v1246
      %v1248 = vrot.slane %v1172, 4
      %v1249 = vadd.f32 %v1172, %v1248
      %v1250 = vrot.slane %v1249, 2
      %v1251 = vadd.f32 %v1249, %v1250
      %v1252 = vrot.slane %v1251, 1
      %v1253 = vadd.f32 %v1251, %v1252
      %v1254 = vrot.slane %v1173, 4
      %v1255 = vadd.f32 %v1173, %v1254
      %v1256 = vrot.slane %v1255, 2
      %v1257 = vadd.f32 %v1255, %v1256
      %v1258 = vrot.slane %v1257, 1
      %v1259 = vadd.f32 %v1257, %v1258
      %v1260 = vrot.slane %v1174, 4
      %v1261 = vadd.f32 %v1174, %v1260
      %v1262 = vrot.slane %v1261, 2
      %v1263 = vadd.f32 %v1261, %v1262
      %v1264 = vrot.slane %v1263, 1
      %v1265 = vadd.f32 %v1263, %v1264
      %v1266 = vrot.slane %v1175, 4
      %v1267 = vadd.f32 %v1175, %v1266
      %v1268 = vrot.slane %v1267, 2
      %v1269 = vadd.f32 %v1267, %v1268
      %v1270 = vrot.slane %v1269, 1
      %v1271 = vadd.f32 %v1269, %v1270
      %v1272 = vsub.f32 %v1062, %v1181
      %v1273 = vsub.f32 %v1063, %v1187
      %v1274 = vsub.f32 %v1064, %v1193
      %v1275 = vsub.f32 %v1065, %v1199
      %v1276 = vsub.f32 %v1066, %v1205
      %v1277 = vsub.f32 %v1067, %v1211
      %v1278 = vsub.f32 %v1068, %v1217
      %v1279 = vsub.f32 %v1069, %v1223
      %v1280 = vsub.f32 %v1070, %v1229
      %v1281 = vsub.f32 %v1071, %v1235
      %v1282 = vsub.f32 %v1072, %v1241
      %v1283 = vsub.f32 %v1073, %v1247
      %v1284 = vsub.f32 %v1074, %v1253
      %v1285 = vsub.f32 %v1075, %v1259
      %v1286 = vsub.f32 %v1076, %v1265
      %v1287 = vsub.f32 %v1077, %v1271
      %v1304 = vcombine.low %v1272, %v1273
      %v1305 = vcombine.low %v1274, %v1275
      %v1306 = vcombine.low %v1276, %v1277
      %v1307 = vcombine.low %v1278, %v1279
      %v1309 = vunpack.c.l.s4 1966171168
      %v1310 = vunpack.c.0.s8 %v1309
      %v1311 = vlaneseq
      %v1312 = vshrl.u32 %v1311, 7
      %v1313 = vsub.s32 %v1310, %v1312
      %v1314 = vrot.slane %v1304, %v1313
      %v1316 = vunpack.c.l.s4 1966171168
      %v1317 = vunpack.c.0.s8 %v1316
      %v1318 = vlaneseq
      %v1319 = vshrl.u32 %v1318, 7
      %v1320 = vsub.s32 %v1317, %v1319
      %v1321 = vrot.slane %v1305, %v1320
      %v1323 = vunpack.c.l.s4 1966171168
      %v1324 = vunpack.c.0.s8 %v1323
      %v1325 = vlaneseq
      %v1326 = vshrl.u32 %v1325, 7
      %v1327 = vsub.s32 %v1324, %v1326
      %v1328 = vrot.slane %v1306, %v1327
      %v1330 = vunpack.c.l.s4 1966171168
      %v1331 = vunpack.c.0.s8 %v1330
      %v1332 = vlaneseq
      %v1333 = vshrl.u32 %v1332, 7
      %v1334 = vsub.s32 %v1331, %v1333
      %v1335 = vrot.slane %v1307, %v1334
      %v1336 = vcombine.low %v1314, %v1321
      %v1337 = vcombine.low %v1328, %v1335
      %v1339 = vunpack.c.l.s4 1966171168
      %v1340 = vunpack.c.0.s8 %v1339
      %v1341 = vlaneseq
      %v1342 = vshrl.u32 %v1341, 7
      %v1343 = vsub.s32 %v1340, %v1342
      %v1344 = vrot.slane %v1336, %v1343
      %v1346 = vunpack.c.l.s4 1966171168
      %v1347 = vunpack.c.0.s8 %v1346
      %v1348 = vlaneseq
      %v1349 = vshrl.u32 %v1348, 7
      %v1350 = vsub.s32 %v1347, %v1349
      %v1351 = vrot.slane %v1337, %v1350
      %v1352 = vcombine.low %v1344, %v1351
      %v1353 = vcombine.low %v1280, %v1281
      %v1354 = vcombine.low %v1282, %v1283
      %v1355 = vcombine.low %v1284, %v1285
      %v1356 = vcombine.low %v1286, %v1287
      %v1358 = vunpack.c.l.s4 1966171168
      %v1359 = vunpack.c.0.s8 %v1358
      %v1360 = vlaneseq
      %v1361 = vshrl.u32 %v1360, 7
      %v1362 = vsub.s32 %v1359, %v1361
      %v1363 = vrot.slane %v1353, %v1362
      %v1365 = vunpack.c.l.s4 1966171168
      %v1366 = vunpack.c.0.s8 %v1365
      %v1367 = vlaneseq
      %v1368 = vshrl.u32 %v1367, 7
      %v1369 = vsub.s32 %v1366, %v1368
      %v1370 = vrot.slane %v1354, %v1369
      %v1372 = vunpack.c.l.s4 1966171168
      %v1373 = vunpack.c.0.s8 %v1372
      %v1374 = vlaneseq
      %v1375 = vshrl.u32 %v1374, 7
      %v1376 = vsub.s32 %v1373, %v1375
      %v1377 = vrot.slane %v1355, %v1376
      %v1379 = vunpack.c.l.s4 1966171168
      %v1380 = vunpack.c.0.s8 %v1379
      %v1381 = vlaneseq
      %v1382 = vshrl.u32 %v1381, 7
      %v1383 = vsub.s32 %v1380, %v1382
      %v1384 = vrot.slane %v1356, %v1383
      %v1385 = vcombine.low %v1363, %v1370
      %v1386 = vcombine.low %v1377, %v1384
      %v1388 = vunpack.c.l.s4 1966171168
      %v1389 = vunpack.c.0.s8 %v1388
      %v1390 = vlaneseq
      %v1391 = vshrl.u32 %v1390, 7
      %v1392 = vsub.s32 %v1389, %v1391
      %v1393 = vrot.slane %v1385, %v1392
      %v1395 = vunpack.c.l.s4 1966171168
      %v1396 = vunpack.c.0.s8 %v1395
      %v1397 = vlaneseq
      %v1398 = vshrl.u32 %v1397, 7
      %v1399 = vsub.s32 %v1396, %v1398
      %v1400 = vrot.slane %v1386, %v1399
      %v1401 = vcombine.low %v1393, %v1400
      %1404 = vst [vmem:[%s186] sm:$0xff] %v1352
      %1405 = vst [vmem:[%s186 + $0x8] sm:$0xff] %v1401
      %s1406 = smul.u32 16, %s17
      %p1407 = scmp.lt.s32.totalorder %s1406, 31
      %s1408 = scalar_select %p1407, %s1406, 31
      %s1409 = scalar_lea.vmem %s4, %s1408
      // Predicated region
      $region29: #{_lambda_.4} parent=27 // pred_check
        %p1410 = pneg %p87
      $region30: #{_lambda_.4} parent=27 // pred_check_branch
        %1412 = sbr.rel (%p1410) target = $region32
      $region31: #{_lambda_.4} parent=27 // pred_region
        %s1413 = smul.u32 16, %s17
      $region32: #{_lambda_.4} parent=27 // pred_fallthru
        _
    $region28: #{_lambda_.4} parent=5 // pred_fallthru
      _
    %p1414 = scmp.le.s32.totalorder 2, %s12
    // Predicated region
    $region33: #{_lambda_.4} parent=5 // pred_check
      %p1415 = pneg %p1414
    $region34: #{_lambda_.4} parent=5 // pred_check_branch
      %1417 = sbr.rel (%p1415) target = $region36
    $region35: #{_lambda_.4} parent=5 // pred_region
      %s1418 = ssub.s32 %s12, 2
      // Predicated region
      $region37: #{_lambda_.4} parent=35 // pred_check
        %p1419 = pneg %p93
      $region38: #{_lambda_.4} parent=35 // pred_check_branch
        %1421 = sbr.rel (%p1419) target = $region40
      $region39: #{_lambda_.4} parent=35 // pred_region
        %s1422 = smul.u32 16, %s18
        %p1423 = scmp.lt.s32.totalorder %s1422, 31
        %s1424 = scalar_select %p1423, %s1422, 31
        %s1425 = scalar_lea.vmem %s4, %s1424
      $region40: #{_lambda_.4} parent=35 // pred_fallthru
        _
    $region36: #{_lambda_.4} parent=5 // pred_fallthru
      _
  $region6: #{_lambda_.4} parent=0 // loop_footer
    %s16 = sadd.s32 1, %s12
  $region7: #{_lambda_.4} parent=0 // loop_footer_branch
    %11 = sbr.rel target = $region3
  $region8: #{_lambda_.4} parent=0 // loop_exit
    _

// kernel: _lambda_.3
$region0: #{_lambda_.3}
  #allocation0 [shape = 'u32[]', space=smem, size = 0x4, offset = 0x4, fixed_abs, tag = 'smem constant byte address 0x4 - core index']
  #allocation1 [shape = 'u32[144,128]{1,0:T(1,128)}', space=vmem, size = 0x12000, scoped, tag = 'internal scratch']
  #allocation2 [shape = 'f32[4,2048]{1,0:T(4,128)}', space=vmem, size = 0x8000, scoped, tag = 'scratch operand']
  #allocation3 [shape = 'f32[1,2048]{1,0:T(1,128)}', space=vmem, size = 0x2000, scoped, tag = 'scratch operand']
  %s0 = inlined_call_operand.vmem [shape: f32[7,4096], index: 0, kind: input, shape index: {}]
  %s1 = inlined_call_operand.vmem [shape: f32[16,128], index: 1, kind: output, shape index: {0}]
  %s2 = inlined_call_operand.vmem [shape: f32[16,128], index: 2, kind: output, shape index: {1}]
  %3 = xla_tuple %s1, %s2
  %s4 = sld [smem:[#allocation0]]
  $region53: #{_lambda_.3} parent=0
    _
  %s6 = ssub.s32 1, %s4
  %s7 = scalar_select 0, %s6, %s4
  loop: start=0, step=1, limit=4
  $region2: #{_lambda_.3} parent=0 // loop_pre_header
    _
  $region3: #{_lambda_.3} parent=0 // loop_header
    %s9 = sphi 0, %s13
    %p10 = scmp.ge.s32.totalorder %s9, 4
    %s16 = sphi 0, %s28
    %s17 = sphi 0, %s24
    %s18 = sphi 0, %s16
    %s19 = sphi 0, %s17
    %s20 = sphi 0, %s18
    %s21 = sphi 0, %s19
    %s33 = sphi 0, %s35
    %s36 = sphi 0, %s33
    %s37 = sphi 0, %s36
    %s53 = sphi 0, %s37
    %s59 = sphi 0, %s61
    %s62 = sphi 0, %s59
    %s63 = sphi 0, %s62
    %s79 = sphi 0, %s63
    %s85 = sphi 0, %s87
    %s88 = sphi 0, %s85
    %s89 = sphi 0, %s88
    %s105 = sphi 0, %s89
  $region4: #{_lambda_.3} parent=0 // loop_header_branch
    %12 = sbr.rel (%p10) target = $region8
  $region5: #{_lambda_.3} parent=0 // loop_body
    %s14 = ssub.s32 %s9, 1
    %s15 = ssub.s32 %s9, 2
    %s22 = sadd.s32 1, %s17
    %p23 = scmp.ge.s32.totalorder %s22, 1
    %s24 = scalar_select %p23, 0, %s22
    %s25 = sadd.s32 1, %s16
    %s26 = scalar_select %p23, %s25, %s16
    %p27 = scmp.ge.s32.totalorder %s26, 2
    %s28 = scalar_select %p27, 0, %s26
    %s29 = sadd.s32 %s16, %s17
    %s30 = sadd.s32 %s28, %s24
    %s31 = ssub.s32 %s29, %s30
    %p32 = scmp.eq.s32.totalorder %s31, 0
    %s34 = sadd.s32 %s33, 1
    %s35 = scalar_select %p32, %s33, %s34
    %p38 = pneg %p32
    %p39 = scmp.eq.s32.totalorder %s9, 1
    %p40 = por %p38, %p39
    %p41 = scmp.ne.s32.totalorder %s33, %s36
    %p42 = scmp.eq.s32.totalorder %s9, 0
    %p43 = por %p41, %p42
    %p44 = scmp.ne.s32.totalorder %s33, %s36
    %p45 = scmp.eq.s32.totalorder %s14, 1
    %p46 = por %p44, %p45
    %p47 = scmp.ne.s32.totalorder %s36, %s37
    %p48 = scmp.eq.s32.totalorder %s14, 0
    %p49 = por %p47, %p48
    %p50 = scmp.ne.s32.totalorder %s36, %s37
    %p51 = scmp.eq.s32.totalorder %s15, 1
    %p52 = por %p50, %p51
    %p54 = scmp.ne.s32.totalorder %s37, %s53
    %p55 = scmp.eq.s32.totalorder %s15, 0
    %p56 = por %p54, %p55
    %s57 = ssub.s32 %s16, %s28
    %p58 = scmp.eq.s32.totalorder %s57, 0
    %s60 = sadd.s32 %s59, 1
    %s61 = scalar_select %p58, %s59, %s60
    %p64 = pneg %p58
    %p65 = scmp.eq.s32.totalorder %s9, 1
    %p66 = por %p64, %p65
    %p67 = scmp.ne.s32.totalorder %s59, %s62
    %p68 = scmp.eq.s32.totalorder %s9, 0
    %p69 = por %p67, %p68
    %p70 = scmp.ne.s32.totalorder %s59, %s62
    %p71 = scmp.eq.s32.totalorder %s14, 1
    %p72 = por %p70, %p71
    %p73 = scmp.ne.s32.totalorder %s62, %s63
    %p74 = scmp.eq.s32.totalorder %s14, 0
    %p75 = por %p73, %p74
    %p76 = scmp.ne.s32.totalorder %s62, %s63
    %p77 = scmp.eq.s32.totalorder %s15, 1
    %p78 = por %p76, %p77
    %p80 = scmp.ne.s32.totalorder %s63, %s79
    %p81 = scmp.eq.s32.totalorder %s15, 0
    %p82 = por %p80, %p81
    %s83 = ssub.s32 %s16, %s28
    %p84 = scmp.eq.s32.totalorder %s83, 0
    %s86 = sadd.s32 %s85, 1
    %s87 = scalar_select %p84, %s85, %s86
    %p90 = pneg %p84
    %p91 = scmp.eq.s32.totalorder %s9, 1
    %p92 = por %p90, %p91
    %p93 = scmp.ne.s32.totalorder %s85, %s88
    %p94 = scmp.eq.s32.totalorder %s9, 0
    %p95 = por %p93, %p94
    %p96 = scmp.ne.s32.totalorder %s85, %s88
    %p97 = scmp.eq.s32.totalorder %s14, 1
    %p98 = por %p96, %p97
    %p99 = scmp.ne.s32.totalorder %s88, %s89
    %p100 = scmp.eq.s32.totalorder %s14, 0
    %p101 = por %p99, %p100
    %p102 = scmp.ne.s32.totalorder %s88, %s89
    %p103 = scmp.eq.s32.totalorder %s15, 1
    %p104 = por %p102, %p103
    %p106 = scmp.ne.s32.totalorder %s89, %s105
    %p107 = scmp.eq.s32.totalorder %s15, 0
    %p108 = por %p106, %p107
    %p109 = scmp.le.s32.totalorder 1, %s9
    %p110 = scmp.lt.s32.totalorder %s9, 3
    %p111 = pnand %p109, %p110
    %p112 = pneg %p111
    // Predicated region
    $region9: #{_lambda_.3} parent=5 // pred_check
      _
    $region10: #{_lambda_.3} parent=5 // pred_check_branch
      %114 = sbr.rel (%p111) target = $region12
    $region11: #{_lambda_.3} parent=5 // pred_region
      %s115 = ssub.s32 %s9, 1
    $region12: #{_lambda_.3} parent=5 // pred_fallthru
      _
    %p116 = scmp.lt.s32.totalorder %s9, 2
    // Predicated region
    $region13: #{_lambda_.3} parent=5 // pred_check
      %p117 = pneg %p116
    $region14: #{_lambda_.3} parent=5 // pred_check_branch
      %119 = sbr.rel (%p117) target = $region16
    $region15: #{_lambda_.3} parent=5 // pred_region
      // Predicated region
      $region17: #{_lambda_.3} parent=15 // pred_check
        %p120 = pneg %p43
      $region18: #{_lambda_.3} parent=15 // pred_check_branch
        %122 = sbr.rel (%p120) target = $region20
      $region19: #{_lambda_.3} parent=15 // pred_region
        %s123 = sadd.s32 %s16, %s17
        %s124 = smul.u32 16, %s123
        %p125 = scmp.lt.s32.totalorder %s124, 31
        %s126 = scalar_select %p125, %s124, 31
        %s127 = smul.addr %s126, 8
        %s128 = scalar_lea.vmem %s0, %s127
        %s129 = sadd.s32 %s16, %s17
        %s130 = smul.u32 16, %s129
      $region20: #{_lambda_.3} parent=15 // pred_fallthru
        _
    $region16: #{_lambda_.3} parent=5 // pred_fallthru
      _
    %p131 = scmp.le.s32.totalorder 1, %s9
    %p132 = scmp.lt.s32.totalorder %s9, 3
    %p133 = pnand %p131, %p132
    %p134 = pneg %p133
    // Predicated region
    $region21: #{_lambda_.3} parent=5 // pred_check
      _
    $region22: #{_lambda_.3} parent=5 // pred_check_branch
      %136 = sbr.rel (%p133) target = $region24
    $region23: #{_lambda_.3} parent=5 // pred_region
      %s137 = ssub.s32 %s9, 1
      %s138 = sadd.s32 %s18, %s19
      %s139 = smul.u32 16, %s138
      %p140 = scmp.lt.s32.totalorder %s139, 31
      %s141 = scalar_select %p140, %s139, 31
      %s142 = smul.addr %s141, 8
      %s143 = scalar_lea.vmem %s0, %s142
      %p144 = pneg %p49
      %p145 = pneg %p46
      %p146 = pneg %p75
      %p147 = pneg %p72
      %p148 = scmp.lt.s32.totalorder %s18, 1
      %s149 = scalar_select %p148, %s18, 1
      %s150 = smul.addr %s149, 8
      %s151 = scalar_lea.vmem %s1, %s150
      %p152 = pneg %p101
      %p153 = pneg %p98
      %p154 = scmp.lt.s32.totalorder %s18, 1
      %s155 = scalar_select %p154, %s18, 1
      %s156 = smul.addr %s155, 8
      %s157 = scalar_lea.vmem %s2, %s156
      %s158 = sadd.s32 %s18, %s19
      %s159 = smul.u32 16, %s158
      %p160 = scmp.lt.s32.totalorder %s159, 31
      %s161 = scalar_select %p160, %s159, 31
      %s162 = smul.addr %s161, 8
      %s163 = scalar_lea.vmem %s0, %s162
      %s164 = sadd.s32 %s18, %s19
      %s165 = smul.u32 16, %s164
      %p166 = scmp.lt.s32.totalorder %s18, 1
      %s167 = scalar_select %p166, %s18, 1
      %s168 = smul.addr %s167, 8
      %s169 = scalar_lea.vmem %s1, %s168
      %p170 = scmp.lt.s32.totalorder %s18, 1
      %s171 = scalar_select %p170, %s18, 1
      %s172 = smul.addr %s171, 8
      %s173 = scalar_lea.vmem %s2, %s172
      %p174 = scmp.eq.s32.totalorder %s19, 0
      // Predicated region
      $region25: #{_lambda_.3} parent=23 // pred_check
        %p175 = pneg %p174
      $region26: #{_lambda_.3} parent=23 // pred_check_branch
        %177 = sbr.rel (%p175) target = $region28
      $region27: #{_lambda_.3} parent=23 // pred_region
        %178 = vst [vmem:[#allocation2] sm:$0xff] 0.0
        %179 = vst [vmem:[#allocation2 + $0x8] sm:$0xff] 0.0
        %180 = vst [vmem:[#allocation2 + $0x10] sm:$0xff] 0.0
        %181 = vst [vmem:[#allocation2 + $0x18] sm:$0xff] 0.0
        %182 = vst [vmem:[#allocation2 + $0x20] sm:$0xff] 0.0
        %183 = vst [vmem:[#allocation2 + $0x28] sm:$0xff] 0.0
        %184 = vst [vmem:[#allocation2 + $0x30] sm:$0xff] 0.0
        %185 = vst [vmem:[#allocation2 + $0x38] sm:$0xff] 0.0
        %186 = vst [vmem:[#allocation3] sm:$0xff] 0.0
        %187 = vst [vmem:[#allocation3 + $0x8] sm:$0xff] 0.0
      $region28: #{_lambda_.3} parent=23 // pred_fallthru
        _
      %v188 = vld [vmem:[%s163] sm:$0x7f]
      %v189 = vld [vmem:[%s163 + $0x8] sm:$0x7f]
      %v190 = vld [vmem:[%s163 + $0x10] sm:$0x7f]
      %v191 = vld [vmem:[%s163 + $0x18] sm:$0x7f]
      %v192 = vld [vmem:[%s163 + $0x20] sm:$0x7f]
      %v193 = vld [vmem:[%s163 + $0x28] sm:$0x7f]
      %v194 = vld [vmem:[%s163 + $0x30] sm:$0x7f]
      %v195 = vld [vmem:[%s163 + $0x38] sm:$0x7f]
      %v196 = vld [vmem:[%s163 + $0x40] sm:$0x7f]
      %v197 = vld [vmem:[%s163 + $0x48] sm:$0x7f]
      %v198 = vld [vmem:[%s163 + $0x50] sm:$0x7f]
      %v199 = vld [vmem:[%s163 + $0x58] sm:$0x7f]
      %v200 = vld [vmem:[%s163 + $0x60] sm:$0x7f]
      %v201 = vld [vmem:[%s163 + $0x68] sm:$0x7f]
      %v202 = vld [vmem:[%s163 + $0x70] sm:$0x7f]
      %v203 = vld [vmem:[%s163 + $0x78] sm:$0x7f]
      %v204 = vand.u32 2147483647, %v188
      %v205 = vand.u32 2147483647, %v189
      %v206 = vand.u32 2147483647, %v190
      %v207 = vand.u32 2147483647, %v191
      %v208 = vand.u32 2147483647, %v192
      %v209 = vand.u32 2147483647, %v193
      %v210 = vand.u32 2147483647, %v194
      %v211 = vand.u32 2147483647, %v195
      %v212 = vand.u32 2147483647, %v196
      %v213 = vand.u32 2147483647, %v197
      %v214 = vand.u32 2147483647, %v198
      %v215 = vand.u32 2147483647, %v199
      %v216 = vand.u32 2147483647, %v200
      %v217 = vand.u32 2147483647, %v201
      %v218 = vand.u32 2147483647, %v202
      %v219 = vand.u32 2147483647, %v203
      %vm220 = vcmp.lt.f32.partialorder %v204, 1.0
      %vm221 = vcmp.lt.f32.partialorder %v205, 1.0
      %vm222 = vcmp.lt.f32.partialorder %v206, 1.0
      %vm223 = vcmp.lt.f32.partialorder %v207, 1.0
      %vm224 = vcmp.lt.f32.partialorder %v208, 1.0
      %vm225 = vcmp.lt.f32.partialorder %v209, 1.0
      %vm226 = vcmp.lt.f32.partialorder %v210, 1.0
      %vm227 = vcmp.lt.f32.partialorder %v211, 1.0
      %vm228 = vcmp.lt.f32.partialorder %v212, 1.0
      %vm229 = vcmp.lt.f32.partialorder %v213, 1.0
      %vm230 = vcmp.lt.f32.partialorder %v214, 1.0
      %vm231 = vcmp.lt.f32.partialorder %v215, 1.0
      %vm232 = vcmp.lt.f32.partialorder %v216, 1.0
      %vm233 = vcmp.lt.f32.partialorder %v217, 1.0
      %vm234 = vcmp.lt.f32.partialorder %v218, 1.0
      %vm235 = vcmp.lt.f32.partialorder %v219, 1.0
      %v236 = vmul.f32 %v188, 0.5
      %v237 = vmul.f32 %v189, 0.5
      %v238 = vmul.f32 %v190, 0.5
      %v239 = vmul.f32 %v191, 0.5
      %v240 = vmul.f32 %v192, 0.5
      %v241 = vmul.f32 %v193, 0.5
      %v242 = vmul.f32 %v194, 0.5
      %v243 = vmul.f32 %v195, 0.5
      %v244 = vmul.f32 %v196, 0.5
      %v245 = vmul.f32 %v197, 0.5
      %v246 = vmul.f32 %v198, 0.5
      %v247 = vmul.f32 %v199, 0.5
      %v248 = vmul.f32 %v200, 0.5
      %v249 = vmul.f32 %v201, 0.5
      %v250 = vmul.f32 %v202, 0.5
      %v251 = vmul.f32 %v203, 0.5
      %v252 = vmul.f32 %v236, %v188
      %v253 = vmul.f32 %v237, %v189
      %v254 = vmul.f32 %v238, %v190
      %v255 = vmul.f32 %v239, %v191
      %v256 = vmul.f32 %v240, %v192
      %v257 = vmul.f32 %v241, %v193
      %v258 = vmul.f32 %v242, %v194
      %v259 = vmul.f32 %v243, %v195
      %v260 = vmul.f32 %v244, %v196
      %v261 = vmul.f32 %v245, %v197
      %v262 = vmul.f32 %v246, %v198
      %v263 = vmul.f32 %v247, %v199
      %v264 = vmul.f32 %v248, %v200
      %v265 = vmul.f32 %v249, %v201
      %v266 = vmul.f32 %v250, %v202
      %v267 = vmul.f32 %v251, %v203
      %v268 = vsub.f32 %v204, 0.5
      %v269 = vsub.f32 %v205, 0.5
      %v270 = vsub.f32 %v206, 0.5
      %v271 = vsub.f32 %v207, 0.5
      %v272 = vsub.f32 %v208, 0.5
      %v273 = vsub.f32 %v209, 0.5
      %v274 = vsub.f32 %v210, 0.5
      %v275 = vsub.f32 %v211, 0.5
      %v276 = vsub.f32 %v212, 0.5
      %v277 = vsub.f32 %v213, 0.5
      %v278 = vsub.f32 %v214, 0.5
      %v279 = vsub.f32 %v215, 0.5
      %v280 = vsub.f32 %v216, 0.5
      %v281 = vsub.f32 %v217, 0.5
      %v282 = vsub.f32 %v218, 0.5
      %v283 = vsub.f32 %v219, 0.5
      %v284 = vsel %vm220, %v252, %v268
      %v285 = vsel %vm221, %v253, %v269
      %v286 = vsel %vm222, %v254, %v270
      %v287 = vsel %vm223, %v255, %v271
      %v288 = vsel %vm224, %v256, %v272
      %v289 = vsel %vm225, %v257, %v273
      %v290 = vsel %vm226, %v258, %v274
      %v291 = vsel %vm227, %v259, %v275
      %v292 = vsel %vm228, %v260, %v276
      %v293 = vsel %vm229, %v261, %v277
      %v294 = vsel %vm230, %v262, %v278
      %v295 = vsel %vm231, %v263, %v279
      %v296 = vsel %vm232, %v264, %v280
      %v297 = vsel %vm233, %v265, %v281
      %v298 = vsel %vm234, %v266, %v282
      %v299 = vsel %vm235, %v267, %v283
      %v300 = vld [vmem:[#allocation2] sm:$0xff]
      %v301 = vld [vmem:[#allocation2 + $0x8] sm:$0xff]
      %v302 = vld [vmem:[#allocation2 + $0x10] sm:$0xff]
      %v303 = vld [vmem:[#allocation2 + $0x18] sm:$0xff]
      %v304 = vld [vmem:[#allocation2 + $0x20] sm:$0xff]
      %v305 = vld [vmem:[#allocation2 + $0x28] sm:$0xff]
      %v306 = vld [vmem:[#allocation2 + $0x30] sm:$0xff]
      %v307 = vld [vmem:[#allocation2 + $0x38] sm:$0xff]
      %v308 = vlaneseq
      %v309 = vshrl.u32 %v308, 7
      %v310 = vsub.s32 4, %v309
      %v311 = vrot.slane %v188, %v310
      %v312 = vlaneseq
      %v313 = vshrl.u32 %v312, 7
      %v314 = vsub.s32 4, %v313
      %v315 = vrot.slane %v189, %v314
      %v316 = vlaneseq
      %v317 = vshrl.u32 %v316, 7
      %v318 = vsub.s32 4, %v317
      %v319 = vrot.slane %v190, %v318
      %v320 = vlaneseq
      %v321 = vshrl.u32 %v320, 7
      %v322 = vsub.s32 4, %v321
      %v323 = vrot.slane %v191, %v322
      %v324 = vlaneseq
      %v325 = vshrl.u32 %v324, 7
      %v326 = vsub.s32 4, %v325
      %v327 = vrot.slane %v192, %v326
      %v328 = vlaneseq
      %v329 = vshrl.u32 %v328, 7
      %v330 = vsub.s32 4, %v329
      %v331 = vrot.slane %v193, %v330
      %v332 = vlaneseq
      %v333 = vshrl.u32 %v332, 7
      %v334 = vsub.s32 4, %v333
      %v335 = vrot.slane %v194, %v334
      %v336 = vlaneseq
      %v337 = vshrl.u32 %v336, 7
      %v338 = vsub.s32 4, %v337
      %v339 = vrot.slane %v195, %v338
      %v340 = vlaneseq
      %v341 = vshrl.u32 %v340, 7
      %v342 = vsub.s32 4, %v341
      %v343 = vrot.slane %v196, %v342
      %v344 = vlaneseq
      %v345 = vshrl.u32 %v344, 7
      %v346 = vsub.s32 4, %v345
      %v347 = vrot.slane %v197, %v346
      %v348 = vlaneseq
      %v349 = vshrl.u32 %v348, 7
      %v350 = vsub.s32 4, %v349
      %v351 = vrot.slane %v198, %v350
      %v352 = vlaneseq
      %v353 = vshrl.u32 %v352, 7
      %v354 = vsub.s32 4, %v353
      %v355 = vrot.slane %v199, %v354
      %v356 = vlaneseq
      %v357 = vshrl.u32 %v356, 7
      %v358 = vsub.s32 4, %v357
      %v359 = vrot.slane %v200, %v358
      %v360 = vlaneseq
      %v361 = vshrl.u32 %v360, 7
      %v362 = vsub.s32 4, %v361
      %v363 = vrot.slane %v201, %v362
      %v364 = vlaneseq
      %v365 = vshrl.u32 %v364, 7
      %v366 = vsub.s32 4, %v365
      %v367 = vrot.slane %v202, %v366
      %v368 = vlaneseq
      %v369 = vshrl.u32 %v368, 7
      %v370 = vsub.s32 4, %v369
      %v371 = vrot.slane %v203, %v370
      %v372 = vmul.f32 %v284, %v311
      %v373 = vmul.f32 %v285, %v315
      %v374 = vmul.f32 %v286, %v319
      %v375 = vmul.f32 %v287, %v323
      %v376 = vmul.f32 %v288, %v327
      %v377 = vmul.f32 %v289, %v331
      %v378 = vmul.f32 %v290, %v335
      %v379 = vmul.f32 %v291, %v339
      %v380 = vmul.f32 %v292, %v343
      %v381 = vmul.f32 %v293, %v347
      %v382 = vmul.f32 %v294, %v351
      %v383 = vmul.f32 %v295, %v355
      %v384 = vmul.f32 %v296, %v359
      %v385 = vmul.f32 %v297, %v363
      %v386 = vmul.f32 %v298, %v367
      %v387 = vmul.f32 %v299, %v371
      %v404 = vcombine.low %v372, %v373
      %v405 = vcombine.low %v374, %v375
      %v406 = vcombine.low %v376, %v377
      %v407 = vcombine.low %v378, %v379
      %v408 = vcombine.low %v380, %v381
      %v409 = vcombine.low %v382, %v383
      %v410 = vcombine.low %v384, %v385
      %v411 = vcombine.low %v386, %v387
      %v420 = vadd.f32 %v300, %v404
      %v421 = vadd.f32 %v301, %v405
      %v422 = vadd.f32 %v302, %v406
      %v423 = vadd.f32 %v303, %v407
      %v424 = vadd.f32 %v304, %v408
      %v425 = vadd.f32 %v305, %v409
      %v426 = vadd.f32 %v306, %v410
      %v427 = vadd.f32 %v307, %v411
      %428 = vst [vmem:[#allocation2] sm:$0xff] %v420
      %429 = vst [vmem:[#allocation2 + $0x8] sm:$0xff] %v421
      %430 = vst [vmem:[#allocation2 + $0x10] sm:$0xff] %v422
      %431 = vst [vmem:[#allocation2 + $0x18] sm:$0xff] %v423
      %432 = vst [vmem:[#allocation2 + $0x20] sm:$0xff] %v424
      %433 = vst [vmem:[#allocation2 + $0x28] sm:$0xff] %v425
      %434 = vst [vmem:[#allocation2 + $0x30] sm:$0xff] %v426
      %435 = vst [vmem:[#allocation2 + $0x38] sm:$0xff] %v427
      %v436 = vld [vmem:[#allocation3] sm:$0xff]
      %v437 = vld [vmem:[#allocation3 + $0x8] sm:$0xff]
      %v454 = vrot.slane %v188, 7
      %v455 = vrot.slane %v189, 7
      %v456 = vrot.slane %v190, 7
      %v457 = vrot.slane %v191, 7
      %v458 = vrot.slane %v192, 7
      %v459 = vrot.slane %v193, 7
      %v460 = vrot.slane %v194, 7
      %v461 = vrot.slane %v195, 7
      %v462 = vrot.slane %v196, 7
      %v463 = vrot.slane %v197, 7
      %v464 = vrot.slane %v198, 7
      %v465 = vrot.slane %v199, 7
      %v466 = vrot.slane %v200, 7
      %v467 = vrot.slane %v201, 7
      %v468 = vrot.slane %v202, 7
      %v469 = vrot.slane %v203, 7
      %v486 = vmul.f32 %v188, %v454
      %v487 = vmul.f32 %v189, %v455
      %v488 = vmul.f32 %v190, %v456
      %v489 = vmul.f32 %v191, %v457
      %v490 = vmul.f32 %v192, %v458
      %v491 = vmul.f32 %v193, %v459
      %v492 = vmul.f32 %v194, %v460
      %v493 = vmul.f32 %v195, %v461
      %v494 = vmul.f32 %v196, %v462
      %v495 = vmul.f32 %v197, %v463
      %v496 = vmul.f32 %v198, %v464
      %v497 = vmul.f32 %v199, %v465
      %v498 = vmul.f32 %v200, %v466
      %v499 = vmul.f32 %v201, %v467
      %v500 = vmul.f32 %v202, %v468
      %v501 = vmul.f32 %v203, %v469
      %v518 = vcombine.high %v486, %v487
      %v519 = vcombine.high %v488, %v489
      %v520 = vcombine.high %v490, %v491
      %v521 = vcombine.high %v492, %v493
      %v523 = vunpack.c.l.s4 1966171168
      %v524 = vunpack.c.0.s8 %v523
      %v525 = vlaneseq
      %v526 = vshrl.u32 %v525, 7
      %v527 = vsub.s32 %v524, %v526
      %v528 = vrot.slane %v518, %v527
      %v530 = vunpack.c.l.s4 1966171168
      %v531 = vunpack.c.0.s8 %v530
      %v532 = vlaneseq
      %v533 = vshrl.u32 %v532, 7
      %v534 = vsub.s32 %v531, %v533
      %v535 = vrot.slane %v519, %v534
      %v537 = vunpack.c.l.s4 1966171168
      %v538 = vunpack.c.0.s8 %v537
      %v539 = vlaneseq
      %v540 = vshrl.u32 %v539, 7
      %v541 = vsub.s32 %v538, %v540
      %v542 = vrot.slane %v520, %v541
      %v544 = vunpack.c.l.s4 1966171168
      %v545 = vunpack.c.0.s8 %v544
      %v546 = vlaneseq
      %v547 = vshrl.u32 %v546, 7
      %v548 = vsub.s32 %v545, %v547
      %v549 = vrot.slane %v521, %v548
      %v550 = vcombine.low %v528, %v535
      %v551 = vcombine.low %v542, %v549
      %v553 = vunpack.c.l.s4 1966171168
      %v554 = vunpack.c.0.s8 %v553
      %v555 = vlaneseq
      %v556 = vshrl.u32 %v555, 7
      %v557 = vsub.s32 %v554, %v556
      %v558 = vrot.slane %v550, %v557
      %v560 = vunpack.c.l.s4 1966171168
      %v561 = vunpack.c.0.s8 %v560
      %v562 = vlaneseq
      %v563 = vshrl.u32 %v562, 7
      %v564 = vsub.s32 %v561, %v563
      %v565 = vrot.slane %v551, %v564
      %v566 = vcombine.high %v558, %v565
      %v567 = vcombine.high %v494, %v495
      %v568 = vcombine.high %v496, %v497
      %v569 = vcombine.high %v498, %v499
      %v570 = vcombine.high %v500, %v501
      %v572 = vunpack.c.l.s4 1966171168
      %v573 = vunpack.c.0.s8 %v572
      %v574 = vlaneseq
      %v575 = vshrl.u32 %v574, 7
      %v576 = vsub.s32 %v573, %v575
      %v577 = vrot.slane %v567, %v576
      %v579 = vunpack.c.l.s4 1966171168
      %v580 = vunpack.c.0.s8 %v579
      %v581 = vlaneseq
      %v582 = vshrl.u32 %v581, 7
      %v583 = vsub.s32 %v580, %v582
      %v584 = vrot.slane %v568, %v583
      %v586 = vunpack.c.l.s4 1966171168
      %v587 = vunpack.c.0.s8 %v586
      %v588 = vlaneseq
      %v589 = vshrl.u32 %v588, 7
      %v590 = vsub.s32 %v587, %v589
      %v591 = vrot.slane %v569, %v590
      %v593 = vunpack.c.l.s4 1966171168
      %v594 = vunpack.c.0.s8 %v593
      %v595 = vlaneseq
      %v596 = vshrl.u32 %v595, 7
      %v597 = vsub.s32 %v594, %v596
      %v598 = vrot.slane %v570, %v597
      %v599 = vcombine.low %v577, %v584
      %v600 = vcombine.low %v591, %v598
      %v602 = vunpack.c.l.s4 1966171168
      %v603 = vunpack.c.0.s8 %v602
      %v604 = vlaneseq
      %v605 = vshrl.u32 %v604, 7
      %v606 = vsub.s32 %v603, %v605
      %v607 = vrot.slane %v599, %v606
      %v609 = vunpack.c.l.s4 1966171168
      %v610 = vunpack.c.0.s8 %v609
      %v611 = vlaneseq
      %v612 = vshrl.u32 %v611, 7
      %v613 = vsub.s32 %v610, %v612
      %v614 = vrot.slane %v600, %v613
      %v615 = vcombine.high %v607, %v614
      %v618 = vadd.f32 %v436, %v566
      %v619 = vadd.f32 %v437, %v615
      %620 = vst [vmem:[#allocation3] sm:$0xff] %v618
      %621 = vst [vmem:[#allocation3 + $0x8] sm:$0xff] %v619
      // Predicated region
      $region29: #{_lambda_.3} parent=23 // pred_check
        %p622 = pneg %p174
      $region30: #{_lambda_.3} parent=23 // pred_check_branch
        %624 = sbr.rel (%p622) target = $region32
      $region31: #{_lambda_.3} parent=23 // pred_region
        %v625 = vld [vmem:[#allocation2] sm:$0xff]
        %v626 = vld [vmem:[#allocation2 + $0x8] sm:$0xff]
        %v627 = vld [vmem:[#allocation2 + $0x10] sm:$0xff]
        %v628 = vld [vmem:[#allocation2 + $0x18] sm:$0xff]
        %v629 = vld [vmem:[#allocation2 + $0x20] sm:$0xff]
        %v630 = vld [vmem:[#allocation2 + $0x28] sm:$0xff]
        %v631 = vld [vmem:[#allocation2 + $0x30] sm:$0xff]
        %v632 = vld [vmem:[#allocation2 + $0x38] sm:$0xff]
        %v641 = vcombine.high %v625, %v625
        %v642 = vcombine.high %v626, %v626
        %v643 = vcombine.high %v627, %v627
        %v644 = vcombine.high %v628, %v628
        %v645 = vcombine.high %v629, %v629
        %v646 = vcombine.high %v630, %v630
        %v647 = vcombine.high %v631, %v631
        %v648 = vcombine.high %v632, %v632
        %vm657 = vcmask 1043456
        %v658 = vsel %vm657, %v625, 0.0
        %v659 = vsel %vm657, %v641, 0.0
        %v660 = vadd.f32 %v658, %v659
        %v661 = vsel %vm657, %v626, 0.0
        %v662 = vadd.f32 %v660, %v661
        %v663 = vsel %vm657, %v642, 0.0
        %v664 = vadd.f32 %v662, %v663
        %v665 = vsel %vm657, %v627, 0.0
        %v666 = vadd.f32 %v664, %v665
        %v667 = vsel %vm657, %v643, 0.0
        %v668 = vadd.f32 %v666, %v667
        %v669 = vsel %vm657, %v628, 0.0
        %v670 = vadd.f32 %v668, %v669
        %v671 = vsel %vm657, %v644, 0.0
        %v672 = vadd.f32 %v670, %v671
        %v673 = vsel %vm657, %v629, 0.0
        %v674 = vadd.f32 %v672, %v673
        %v675 = vsel %vm657, %v645, 0.0
        %v676 = vadd.f32 %v674, %v675
        %v677 = vsel %vm657, %v630, 0.0
        %v678 = vadd.f32 %v676, %v677
        %v679 = vsel %vm657, %v646, 0.0
        %v680 = vadd.f32 %v678, %v679
        %v681 = vsel %vm657, %v631, 0.0
        %v682 = vadd.f32 %v680, %v681
        %v683 = vsel %vm657, %v647, 0.0
        %v684 = vadd.f32 %v682, %v683
        %v685 = vsel %vm657, %v632, 0.0
        %v686 = vadd.f32 %v684, %v685
        %v687 = vsel %vm657, %v648, 0.0
        %v688 = vadd.f32 %v686, %v687
        %689 = vadd.xlane.f32.xlu0 %v688
        %v690 = vpop.xlane.xlu0 %689
        %v691 = vsel %vm657, %v690, 0.0
        %v692 = vrot.slane %v691, 4
        %v693 = vadd.f32 %v691, %v692
        %v694 = vrot.slane %v693, 2
        %v695 = vadd.f32 %v693, %v694
        %v696 = vrot.slane %v695, 1
        %v697 = vadd.f32 %v695, %v696
        %v698 = vld [vmem:[#allocation3] sm:$0xff]
        %v699 = vld [vmem:[#allocation3 + $0x8] sm:$0xff]
        %v702 = vlaneseq
        %v703 = vshrl.u32 %v702, 7
        %v704 = vsub.s32 0, %v703
        %v705 = vrot.slane %v698, %v704
        %v706 = vlaneseq
        %v707 = vshrl.u32 %v706, 7
        %v708 = vsub.s32 1, %v707
        %v709 = vrot.slane %v698, %v708
        %v710 = vlaneseq
        %v711 = vshrl.u32 %v710, 7
        %v712 = vsub.s32 2, %v711
        %v713 = vrot.slane %v698, %v712
        %v714 = vlaneseq
        %v715 = vshrl.u32 %v714, 7
        %v716 = vsub.s32 3, %v715
        %v717 = vrot.slane %v698, %v716
        %v718 = vlaneseq
        %v719 = vshrl.u32 %v718, 7
        %v720 = vsub.s32 4, %v719
        %v721 = vrot.slane %v698, %v720
        %v722 = vlaneseq
        %v723 = vshrl.u32 %v722, 7
        %v724 = vsub.s32 5, %v723
        %v725 = vrot.slane %v698, %v724
        %v726 = vlaneseq
        %v727 = vshrl.u32 %v726, 7
        %v728 = vsub.s32 6, %v727
        %v729 = vrot.slane %v698, %v728
        %v730 = vlaneseq
        %v731 = vshrl.u32 %v730, 7
        %v732 = vsub.s32 7, %v731
        %v733 = vrot.slane %v698, %v732
        %v734 = vlaneseq
        %v735 = vshrl.u32 %v734, 7
        %v736 = vsub.s32 0, %v735
        %v737 = vrot.slane %v699, %v736
        %v738 = vlaneseq
        %v739 = vshrl.u32 %v738, 7
        %v740 = vsub.s32 1, %v739
        %v741 = vrot.slane %v699, %v740
        %v742 = vlaneseq
        %v743 = vshrl.u32 %v742, 7
        %v744 = vsub.s32 2, %v743
        %v745 = vrot.slane %v699, %v744
        %v746 = vlaneseq
        %v747 = vshrl.u32 %v746, 7
        %v748 = vsub.s32 3, %v747
        %v749 = vrot.slane %v699, %v748
        %v750 = vlaneseq
        %v751 = vshrl.u32 %v750, 7
        %v752 = vsub.s32 4, %v751
        %v753 = vrot.slane %v699, %v752
        %v754 = vlaneseq
        %v755 = vshrl.u32 %v754, 7
        %v756 = vsub.s32 5, %v755
        %v757 = vrot.slane %v699, %v756
        %v758 = vlaneseq
        %v759 = vshrl.u32 %v758, 7
        %v760 = vsub.s32 6, %v759
        %v761 = vrot.slane %v699, %v760
        %v762 = vlaneseq
        %v763 = vshrl.u32 %v762, 7
        %v764 = vsub.s32 7, %v763
        %v765 = vrot.slane %v699, %v764
        %vm782 = vcmask 1040384
        %v783 = vsel %vm782, %v705, 0.0
        %v784 = vsel %vm782, %v709, 0.0
        %v785 = vadd.f32 %v783, %v784
        %v786 = vsel %vm782, %v713, 0.0
        %v787 = vadd.f32 %v785, %v786
        %v788 = vsel %vm782, %v717, 0.0
        %v789 = vadd.f32 %v787, %v788
        %v790 = vsel %vm782, %v721, 0.0
        %v791 = vadd.f32 %v789, %v790
        %v792 = vsel %vm782, %v725, 0.0
        %v793 = vadd.f32 %v791, %v792
        %v794 = vsel %vm782, %v729, 0.0
        %v795 = vadd.f32 %v793, %v794
        %v796 = vsel %vm782, %v733, 0.0
        %v797 = vadd.f32 %v795, %v796
        %v798 = vsel %vm782, %v737, 0.0
        %v799 = vadd.f32 %v797, %v798
        %v800 = vsel %vm782, %v741, 0.0
        %v801 = vadd.f32 %v799, %v800
        %v802 = vsel %vm782, %v745, 0.0
        %v803 = vadd.f32 %v801, %v802
        %v804 = vsel %vm782, %v749, 0.0
        %v805 = vadd.f32 %v803, %v804
        %v806 = vsel %vm782, %v753, 0.0
        %v807 = vadd.f32 %v805, %v806
        %v808 = vsel %vm782, %v757, 0.0
        %v809 = vadd.f32 %v807, %v808
        %v810 = vsel %vm782, %v761, 0.0
        %v811 = vadd.f32 %v809, %v810
        %v812 = vsel %vm782, %v765, 0.0
        %v813 = vadd.f32 %v811, %v812
        %814 = vadd.xlane.f32.xlu0 %v813
        %v815 = vpop.xlane.xlu0 %814
        %v816 = vadd.f32 %v815, 0.0
        %817 = vst [vmem:[%s169] sm:$0xff] %v697
        %v818 = vlaneseq
        %v819 = vshrl.u32 %v818, 7
        %v820 = vsub.s32 0, %v819
        %v821 = vrot.slane %v816, %v820
        %822 = vst [vmem:[%s173] sm:$0xff] %v821
      $region32: #{_lambda_.3} parent=23 // pred_fallthru
        _
      %p823 = scmp.lt.s32.totalorder %s18, 1
      %s824 = scalar_select %p823, %s18, 1
      %s825 = smul.addr %s824, 8
      %s826 = scalar_lea.vmem %s1, %s825
      %p827 = scmp.lt.s32.totalorder %s18, 1
      %s828 = scalar_select %p827, %s18, 1
      %s829 = smul.addr %s828, 8
      %s830 = scalar_lea.vmem %s2, %s829
      // Predicated region
      $region33: #{_lambda_.3} parent=23 // pred_check
        %p831 = pneg %p72
      $region34: #{_lambda_.3} parent=23 // pred_check_branch
        %833 = sbr.rel (%p831) target = $region36
      $region35: #{_lambda_.3} parent=23 // pred_region
        _
      $region36: #{_lambda_.3} parent=23 // pred_fallthru
        _
      // Predicated region
      $region37: #{_lambda_.3} parent=23 // pred_check
        %p834 = pneg %p98
      $region38: #{_lambda_.3} parent=23 // pred_check_branch
        %836 = sbr.rel (%p834) target = $region40
      $region39: #{_lambda_.3} parent=23 // pred_region
        _
      $region40: #{_lambda_.3} parent=23 // pred_fallthru
        _
    $region24: #{_lambda_.3} parent=5 // pred_fallthru
      _
    %p837 = scmp.le.s32.totalorder 2, %s9
    // Predicated region
    $region41: #{_lambda_.3} parent=5 // pred_check
      %p838 = pneg %p837
    $region42: #{_lambda_.3} parent=5 // pred_check_branch
      %840 = sbr.rel (%p838) target = $region44
    $region43: #{_lambda_.3} parent=5 // pred_region
      %s841 = ssub.s32 %s9, 2
      // Predicated region
      $region45: #{_lambda_.3} parent=43 // pred_check
        %p842 = pneg %p78
      $region46: #{_lambda_.3} parent=43 // pred_check_branch
        %844 = sbr.rel (%p842) target = $region48
      $region47: #{_lambda_.3} parent=43 // pred_region
        %p845 = scmp.lt.s32.totalorder %s20, 1
        %s846 = scalar_select %p845, %s20, 1
        %s847 = smul.addr %s846, 8
        %s848 = scalar_lea.vmem %s1, %s847
      $region48: #{_lambda_.3} parent=43 // pred_fallthru
        _
      // Predicated region
      $region49: #{_lambda_.3} parent=43 // pred_check
        %p849 = pneg %p104
      $region50: #{_lambda_.3} parent=43 // pred_check_branch
        %851 = sbr.rel (%p849) target = $region52
      $region51: #{_lambda_.3} parent=43 // pred_region
        %p852 = scmp.lt.s32.totalorder %s20, 1
        %s853 = scalar_select %p852, %s20, 1
        %s854 = smul.addr %s853, 8
        %s855 = scalar_lea.vmem %s2, %s854
      $region52: #{_lambda_.3} parent=43 // pred_fallthru
        _
    $region44: #{_lambda_.3} parent=5 // pred_fallthru
      _
  $region6: #{_lambda_.3} parent=0 // loop_footer
    %s13 = sadd.s32 1, %s9
  $region7: #{_lambda_.3} parent=0 // loop_footer_branch
    %8 = sbr.rel target = $region3
  $region8: #{_lambda_.3} parent=0 // loop_exit
    _

</llo_original>
